<compile_context>
chip_gen: v7x
topology: tpu7x:2x2x1
jax: 0.10.0
libtpu: 0.0.40
codegen_flags: <defaults>
</compile_context>

<pallas_src>
import functools

import jax
import jax.numpy as jnp
from jax.experimental import pallas as pl
from jax.experimental.pallas import tpu as pltpu


def _fused_conv_bn_relu_kernel(cols_ref, w_ref, gamma_ref, beta_ref, out_ref,
                               stat_ref, *, m_total, block_rows, eps):
    """One grid step = one row-tile of the im2col matmul.

    cols_ref  : (block_rows, 9*Cin)  compute-dtype im2col tile
    w_ref     : (9*Cin, Cout)        compute-dtype weights (resident across the grid)
    gamma/beta: (1, Cout)            f32 BN affine params (resident)
    out_ref   : (m_total, Cout) f32  SAME block every step -> resident in VMEM, flushed
                                     to HBM exactly once after BN + ReLU
    stat_ref  : (2, Cout) f32 VMEM scratch: row 0 = running sum, row 1 = running sum sq
    """
    i = pl.program_id(0)

    # 3x3 conv as a single im2col matmul on the MXU (K = 9*Cin), f32 accumulation.
    y = jnp.dot(cols_ref[...], w_ref[...], preferred_element_type=jnp.float32)

    # Stash the conv tile into the resident output buffer (no HBM round-trip).
    row0 = pl.multiple_of(i * block_rows, block_rows)
    out_ref[pl.ds(row0, block_rows), :] = y

    # One-pass batch statistics: per-channel running sum and sum of squares.
    @pl.when(i == 0)
    def _():
        stat_ref[...] = jnp.zeros_like(stat_ref)

    stat_ref[0:1, :] += jnp.sum(y, axis=0, keepdims=True)
    stat_ref[1:2, :] += jnp.sum(y * y, axis=0, keepdims=True)

    # Last step: finalize BN (biased batch variance = PyTorch training forward) + ReLU,
    # in place on the resident buffer.
    @pl.when(i == pl.num_programs(0) - 1)
    def _():
        inv_n = jnp.float32(1.0 / m_total)
        mean = stat_ref[0:1, :] * inv_n
        var = jnp.maximum(stat_ref[1:2, :] * inv_n - mean * mean, 0.0)
        scale = gamma_ref[...] * jax.lax.rsqrt(var + jnp.float32(eps))
        shift = beta_ref[...] - mean * scale
        out_ref[...] = jnp.maximum(out_ref[...] * scale + shift, 0.0)


def _pick_block_rows(m_total, target):
    """Largest row-tile <= target that divides m_total and is a multiple of 8."""
    if m_total <= target:
        return m_total
    start = target - (target % 8)
    for t in range(start, 7, -8):
        if m_total % t == 0:
            return t
    return m_total  # no aligned divisor: fall back to a single block


def conv_bn_relu_first(x_nchw, w_hwio, gamma, beta, eps=1e-5,
                       block_rows_target=4096, compute_dtype=jnp.bfloat16):
    N, Cin, H, W = x_nchw.shape
    Cout = w_hwio.shape[-1]
    m_total = N * H * W
    k_dim = 9 * Cin

    # Wrapper-side im2col (fuses into one XLA pre-pass): NCHW -> NHWC -> pad -> (M, 9*Cin).
    # This gives the kernel a lane-dense slab instead of Cin=4 on the lane dim with nine
    # strided slice/reshape relayouts per step.
    # TODO(synk): keep activations NHWC end-to-end across ADNet layers so the NCHW<->NHWC
    #             transposes at the module boundary disappear.
    x = jnp.transpose(x_nchw, (0, 2, 3, 1))
    xp = jnp.pad(x, ((0, 0), (1, 1), (1, 1), (0, 0)))
    cols = jnp.concatenate(
        [xp[:, dy:dy + H, dx:dx + W, :] for dy in range(3) for dx in range(3)],
        axis=-1,
    ).reshape(m_total, k_dim).astype(compute_dtype)
    w2d = w_hwio.reshape(k_dim, Cout).astype(compute_dtype)   # (dy, dx, cin) order matches cols

    block_rows = _pick_block_rows(m_total, block_rows_target)
    grid = (m_total // block_rows,)

    kernel = functools.partial(_fused_conv_bn_relu_kernel,
                               m_total=m_total, block_rows=block_rows, eps=eps)

    # TODO(synk): for very large N*H*W the resident conv buffer exceeds VMEM (esp. v7x's
    #             64 MiB); switch to a two-pass grid (stats pass + normalize pass) or a
    #             cross-core hierarchical stats reduction to keep a parallel axis on v7x.
    out_flat = pl.pallas_call(
        kernel,
        grid=grid,
        in_specs=[
            pl.BlockSpec((block_rows, k_dim), lambda i: (i, 0)),  # im2col row-tile
            pl.BlockSpec((k_dim, Cout), lambda i: (0, 0)),        # weights, resident
            pl.BlockSpec((1, Cout), lambda i: (0, 0)),            # gamma, resident
            pl.BlockSpec((1, Cout), lambda i: (0, 0)),            # beta, resident
        ],
        # Same output block every step -> conv output stays resident in VMEM across the
        # whole grid and is DMA'd to HBM exactly once, after BN + ReLU.
        out_specs=pl.BlockSpec((m_total, Cout), lambda i: (0, 0)),
        out_shape=jax.ShapeDtypeStruct((m_total, Cout), jnp.float32),
        scratch_shapes=[pltpu.VMEM((2, Cout), jnp.float32)],
        compiler_params=pltpu.CompilerParams(
            # Row-tile axis carries the stats accumulation + resident output -> reduction axis.
            dimension_semantics=("arbitrary",),
            vmem_limit_bytes=48 * 1024 * 1024,
        ),
    )(cols, w2d,
      gamma.reshape(1, Cout).astype(jnp.float32),
      beta.reshape(1, Cout).astype(jnp.float32))

    # (N*H*W, Cout) -> NCHW to mirror the PyTorch module's output layout.
    return jnp.transpose(out_flat.reshape(N, H, W, Cout), (0, 3, 1, 2))


def _reference(x_nchw, w_hwio, gamma, beta, eps=1e-5):
    """Plain-JAX f32 reference (lax conv, training-mode BN, ReLU) in NCHW."""
    w_oihw = jnp.transpose(w_hwio, (3, 2, 0, 1))
    conv = jax.lax.conv_general_dilated(
        x_nchw.astype(jnp.float32), w_oihw.astype(jnp.float32),
        window_strides=(1, 1), padding=((1, 1), (1, 1)),
        dimension_numbers=("NCHW", "OIHW", "NCHW"),
    )
    mean = conv.mean(axis=(0, 2, 3), keepdims=True)
    var = ((conv - mean) ** 2).mean(axis=(0, 2, 3), keepdims=True)
    g = gamma.reshape(1, -1, 1, 1)
    b = beta.reshape(1, -1, 1, 1)
    return jnp.maximum((conv - mean) * jax.lax.rsqrt(var + eps) * g + b, 0.0)


if __name__ == "__main__":
    # small shapes: batch=2, in_channels=4, spatial=16x16; out_channels=64 (features in the module)
    N, Cin, H, W = 2, 4, 16, 16
    Cout = 64

    key = jax.random.PRNGKey(0)
    kx, kw, kg, kb = jax.random.split(key, 4)

    x = jax.random.normal(kx, (N, Cin, H, W), dtype=jnp.float32)
    # Conv2d weight, bias=False. PyTorch stores OIHW = (64, Cin, 3, 3); we keep HWIO.
    w_hwio = 0.1 * jax.random.normal(kw, (3, 3, Cin, Cout), dtype=jnp.float32)
    # BatchNorm2d affine params (near PyTorch init gamma=1, beta=0)
    gamma = 1.0 + 0.1 * jax.random.normal(kg, (Cout,), dtype=jnp.float32)
    beta = 0.1 * jax.random.normal(kb, (Cout,), dtype=jnp.float32)

    ref = jax.block_until_ready(_reference(x, w_hwio, gamma, beta))

    # Default path: bf16 MXU compute (f32 accumulation), single row-tile at this size.
    out = jax.block_until_ready(conv_bn_relu_first(x, w_hwio, gamma, beta))
    assert out.shape == (N, Cout, H, W)
    assert jnp.allclose(out, ref, atol=5e-2, rtol=5e-2)

    # f32 compute with small row-tiles: exercises the multi-step stats-accumulation /
    # pl.when paths with a tight tolerance.
    out_f32 = jax.block_until_ready(
        conv_bn_relu_first(x, w_hwio, gamma, beta,
                           block_rows_target=128, compute_dtype=jnp.float32))
    assert jnp.allclose(out_f32, ref, atol=1e-3, rtol=1e-3)

    print("KERNEL_OK")
</pallas_src>

<mosaic_0001>
module attributes {stable_mosaic.version = 11 : i64} {
  func.func @_fused_conv_bn_relu_kernel(%arg0: i32, %arg1: memref<512x36xbf16, #tpu.memory_space<vmem>>, %arg2: memref<36x64xbf16, #tpu.memory_space<vmem>>, %arg3: memref<1x64xf32, #tpu.memory_space<vmem>>, %arg4: memref<1x64xf32, #tpu.memory_space<vmem>>, %arg5: memref<512x64xf32, #tpu.memory_space<vmem>>, %arg6: memref<2x64xf32, #tpu.memory_space<vmem>>) attributes {dimension_semantics = [#tpu.dimension_semantics<arbitrary>], iteration_bounds = array<i64: 1>, scalar_prefetch = 0 : i64, scratch_operands = 1 : i64, tpu.core_type = #tpu.core_type<tc>, window_params = [{transform_indices = @transform_0, window_bounds = array<i64: 512, 36>}, {pipeline_mode = #tpu.pipeline_mode<synchronous>, transform_indices = @transform_1, window_bounds = array<i64: 36, 64>}, {pipeline_mode = #tpu.pipeline_mode<synchronous>, transform_indices = @transform_2, window_bounds = array<i64: 1, 64>}, {pipeline_mode = #tpu.pipeline_mode<synchronous>, transform_indices = @transform_3, window_bounds = array<i64: 1, 64>}, {pipeline_mode = #tpu.pipeline_mode<synchronous>, transform_indices = @transform_4, window_bounds = array<i64: 512, 64>}]} {
    %c0 = arith.constant 0 : index
    %c0_0 = arith.constant 0 : index
    %0 = vector.load %arg1[%c0, %c0_0] : memref<512x36xbf16, #tpu.memory_space<vmem>>, vector<512x36xbf16>
    %c0_1 = arith.constant 0 : index
    %c0_2 = arith.constant 0 : index
    %1 = vector.load %arg2[%c0_1, %c0_2] : memref<36x64xbf16, #tpu.memory_space<vmem>>, vector<36x64xbf16>
    %cst = arith.constant dense<0.000000e+00> : vector<512x64xf32>
    %2 = tpu.matmul %0, %1, %cst {dimension_numbers = #tpu.dot_dimension_numbers<[1], [0], [0], [1], [0, 0, 1, 1], [], []>} : vector<512x36xbf16>, vector<36x64xbf16>, vector<512x64xf32> -> vector<512x64xf32>
    %c512_i32 = arith.constant 512 : i32
    %3 = arith.muli %arg0, %c512_i32 : i32
    %4 = tpu.assume_multiple %3, 512 : i32
    %5 = arith.index_cast %4 : i32 to index
    %c0_3 = arith.constant 0 : index
    %6 = vector.load %arg5[%5, %c0_3] : memref<512x64xf32, #tpu.memory_space<vmem>>, vector<512x64xf32>
    tpu.vector_store %arg5[%5, %c0_3], %2 {strides = array<i32>} : memref<512x64xf32, #tpu.memory_space<vmem>>, vector<512x64xf32>,
    %c0_i32 = arith.constant 0 : i32
    %7 = arith.cmpi eq, %arg0, %c0_i32 : i32
    %8 = arith.extui %7 : i1 to i32
    %c0_i32_4 = arith.constant 0 : i32
    %9 = arith.cmpi ne, %8, %c0_i32_4 : i32
    scf.if %9 {
      %cst_16 = arith.constant 0.000000e+00 : f32
      %24 = vector.broadcast %cst_16 : f32 to vector<2x64xf32>
      %c0_17 = arith.constant 0 : index
      %c0_18 = arith.constant 0 : index
      %25 = vector.load %arg6[%c0_17, %c0_18] : memref<2x64xf32, #tpu.memory_space<vmem>>, vector<2x64xf32>
      tpu.vector_store %arg6[%c0_17, %c0_18], %24 {strides = array<i32>} : memref<2x64xf32, #tpu.memory_space<vmem>>, vector<2x64xf32>,
    } else {
    }
    %c0_5 = arith.constant 0 : index
    %c0_6 = arith.constant 0 : index
    %10 = vector.load %arg6[%c0_5, %c0_6] : memref<2x64xf32, #tpu.memory_space<vmem>>, vector<1x64xf32>
    %cst_7 = arith.constant dense<0.000000e+00> : vector<64xf32>
    %11 = vector.multi_reduction <add>, %2, %cst_7 [0] : vector<512x64xf32> to vector<64xf32>
    %12 = vector.shape_cast %11 : vector<64xf32> to vector<1x64xf32>
    %13 = arith.addf %10, %12 : vector<1x64xf32>
    %c0_8 = arith.constant 0 : index
    %c0_9 = arith.constant 0 : index
    %14 = vector.load %arg6[%c0_8, %c0_9] : memref<2x64xf32, #tpu.memory_space<vmem>>, vector<1x64xf32>
    tpu.vector_store %arg6[%c0_8, %c0_9], %13 {strides = array<i32>} : memref<2x64xf32, #tpu.memory_space<vmem>>, vector<1x64xf32>,
    %c1 = arith.constant 1 : index
    %c0_10 = arith.constant 0 : index
    %15 = vector.load %arg6[%c1, %c0_10] : memref<2x64xf32, #tpu.memory_space<vmem>>, vector<1x64xf32>
    %16 = arith.mulf %2, %2 : vector<512x64xf32>
    %cst_11 = arith.constant dense<0.000000e+00> : vector<64xf32>
    %17 = vector.multi_reduction <add>, %16, %cst_11 [0] : vector<512x64xf32> to vector<64xf32>
    %18 = vector.shape_cast %17 : vector<64xf32> to vector<1x64xf32>
    %19 = arith.addf %15, %18 : vector<1x64xf32>
    %c1_12 = arith.constant 1 : index
    %c0_13 = arith.constant 0 : index
    %20 = vector.load %arg6[%c1_12, %c0_13] : memref<2x64xf32, #tpu.memory_space<vmem>>, vector<1x64xf32>
    tpu.vector_store %arg6[%c1_12, %c0_13], %19 {strides = array<i32>} : memref<2x64xf32, #tpu.memory_space<vmem>>, vector<1x64xf32>,
    %c0_i32_14 = arith.constant 0 : i32
    %21 = arith.cmpi eq, %arg0, %c0_i32_14 : i32
    %22 = arith.extui %21 : i1 to i32
    %c0_i32_15 = arith.constant 0 : i32
    %23 = arith.cmpi ne, %22, %c0_i32_15 : i32
    scf.if %23 {
      %c0_16 = arith.constant 0 : index
      %c0_17 = arith.constant 0 : index
      %24 = vector.load %arg6[%c0_16, %c0_17] : memref<2x64xf32, #tpu.memory_space<vmem>>, vector<1x64xf32>
      %cst_18 = arith.constant 0.001953125 : f32
      %25 = vector.broadcast %cst_18 : f32 to vector<1x64xf32>
      %26 = arith.mulf %24, %25 : vector<1x64xf32>
      %c1_19 = arith.constant 1 : index
      %c0_20 = arith.constant 0 : index
      %27 = vector.load %arg6[%c1_19, %c0_20] : memref<2x64xf32, #tpu.memory_space<vmem>>, vector<1x64xf32>
      %cst_21 = arith.constant 0.001953125 : f32
      %28 = vector.broadcast %cst_21 : f32 to vector<1x64xf32>
      %29 = arith.mulf %27, %28 : vector<1x64xf32>
      %30 = arith.mulf %26, %26 : vector<1x64xf32>
      %31 = arith.subf %29, %30 : vector<1x64xf32>
      %cst_22 = arith.constant 0.000000e+00 : f32
      %32 = vector.broadcast %cst_22 : f32 to vector<1x64xf32>
      %33 = arith.maximumf %31, %32 : vector<1x64xf32>
      %c0_23 = arith.constant 0 : index
      %c0_24 = arith.constant 0 : index
      %34 = vector.load %arg3[%c0_23, %c0_24] : memref<1x64xf32, #tpu.memory_space<vmem>>, vector<1x64xf32>
      %cst_25 = arith.constant 9.99999974E-6 : f32
      %35 = vector.broadcast %cst_25 : f32 to vector<1x64xf32>
      %36 = arith.addf %33, %35 : vector<1x64xf32>
      %37 = math.rsqrt %36 : vector<1x64xf32>
      %38 = arith.mulf %34, %37 : vector<1x64xf32>
      %c0_26 = arith.constant 0 : index
      %c0_27 = arith.constant 0 : index
      %39 = vector.load %arg4[%c0_26, %c0_27] : memref<1x64xf32, #tpu.memory_space<vmem>>, vector<1x64xf32>
      %40 = arith.mulf %26, %38 : vector<1x64xf32>
      %41 = arith.subf %39, %40 : vector<1x64xf32>
      %c0_28 = arith.constant 0 : index
      %c0_29 = arith.constant 0 : index
      %42 = vector.load %arg5[%c0_28, %c0_29] : memref<512x64xf32, #tpu.memory_space<vmem>>, vector<512x64xf32>
      %43 = vector.broadcast %38 : vector<1x64xf32> to vector<512x64xf32>
      %44 = arith.mulf %42, %43 : vector<512x64xf32>
      %45 = vector.broadcast %41 : vector<1x64xf32> to vector<512x64xf32>
      %46 = arith.addf %44, %45 : vector<512x64xf32>
      %cst_30 = arith.constant 0.000000e+00 : f32
      %47 = vector.broadcast %cst_30 : f32 to vector<512x64xf32>
      %48 = arith.maximumf %46, %47 : vector<512x64xf32>
      %c0_31 = arith.constant 0 : index
      %c0_32 = arith.constant 0 : index
      %49 = vector.load %arg5[%c0_31, %c0_32] : memref<512x64xf32, #tpu.memory_space<vmem>>, vector<512x64xf32>
      tpu.vector_store %arg5[%c0_31, %c0_32], %48 {strides = array<i32>} : memref<512x64xf32, #tpu.memory_space<vmem>>, vector<512x64xf32>,
    } else {
    }
    return
  }
  func.func @transform_0(%arg0: i32) -> (i32, i32) {
    %c0_i32 = arith.constant 0 : i32
    %c0_i32_0 = arith.constant 0 : i32
    return %arg0, %c0_i32 : i32, i32
  }
  func.func @transform_1(%arg0: i32) -> (i32, i32) {
    %c0_i32 = arith.constant 0 : i32
    %c0_i32_0 = arith.constant 0 : i32
    %c0_i32_1 = arith.constant 0 : i32
    return %c0_i32, %c0_i32_0 : i32, i32
  }
  func.func @transform_2(%arg0: i32) -> (i32, i32) {
    %c0_i32 = arith.constant 0 : i32
    %c0_i32_0 = arith.constant 0 : i32
    %c0_i32_1 = arith.constant 0 : i32
    return %c0_i32, %c0_i32_0 : i32, i32
  }
  func.func @transform_3(%arg0: i32) -> (i32, i32) {
    %c0_i32 = arith.constant 0 : i32
    %c0_i32_0 = arith.constant 0 : i32
    %c0_i32_1 = arith.constant 0 : i32
    return %c0_i32, %c0_i32_0 : i32, i32
  }
  func.func @transform_4(%arg0: i32) -> (i32, i32) {
    %c0_i32 = arith.constant 0 : i32
    %c0_i32_0 = arith.constant 0 : i32
    %c0_i32_1 = arith.constant 0 : i32
    return %c0_i32, %c0_i32_0 : i32, i32
  }
}

</mosaic_0001>

<llo_original>
// kernel: tpu_custom_call.1
$region0: #{tpu_custom_call.1}
  #allocation0 [shape = 'u32[]', space=smem, size = 0x4, offset = 0x4, fixed_abs, tag = 'smem constant byte address 0x4 - core index']
  #allocation1 [shape = 'u32[144,128]{1,0:T(1,128)}', space=vmem, size = 0x12000, scoped, tag = 'internal scratch']
  #allocation2 [shape = 'f32[2,64]{1,0:T(2,128)}', space=vmem, size = 0x400, scoped, tag = 'scratch operand']
  %s0 = inlined_call_operand.vmem [shape: bf16[512,36], index: 0, kind: input, shape index: {}]
  %s1 = inlined_call_operand.vmem [shape: bf16[36,64], index: 1, kind: input, shape index: {}]
  %s2 = inlined_call_operand.vmem [shape: f32[1,64], index: 2, kind: input, shape index: {}]
  %s3 = inlined_call_operand.vmem [shape: f32[1,64], index: 3, kind: input, shape index: {}]
  %s4 = inlined_call_operand.vmem [shape: f32[512,64], index: 4, kind: output, shape index: {}]
  %s5 = sld [smem:[#allocation0]]
  $region34: #{tpu_custom_call.1} parent=0
    _
  %s7 = ssub.s32 1, %s5
  %s8 = scalar_select 0, %s7, %s5
  // Predicated region
  $region2: #{tpu_custom_call.1} parent=0 // pred_check
    _
  $region3: #{tpu_custom_call.1} parent=0 // pred_check_branch
    %10 = sbr.rel (0) target = $region5
  $region4: #{tpu_custom_call.1} parent=0 // pred_region
    _
  $region5: #{tpu_custom_call.1} parent=0 // pred_fallthru
    _
  // Predicated region
  $region6: #{tpu_custom_call.1} parent=0 // pred_check
    _
  $region7: #{tpu_custom_call.1} parent=0 // pred_check_branch
    %12 = sbr.rel (0) target = $region9
  $region8: #{tpu_custom_call.1} parent=0 // pred_region
    _
  $region9: #{tpu_custom_call.1} parent=0 // pred_fallthru
    _
  // Predicated region
  $region10: #{tpu_custom_call.1} parent=0 // pred_check
    _
  $region11: #{tpu_custom_call.1} parent=0 // pred_check_branch
    %14 = sbr.rel (0) target = $region13
  $region12: #{tpu_custom_call.1} parent=0 // pred_region
    _
  $region13: #{tpu_custom_call.1} parent=0 // pred_fallthru
    _
  // Predicated region
  $region14: #{tpu_custom_call.1} parent=0 // pred_check
    _
  $region15: #{tpu_custom_call.1} parent=0 // pred_check_branch
    %16 = sbr.rel (0) target = $region17
  $region16: #{tpu_custom_call.1} parent=0 // pred_region
    _
  $region17: #{tpu_custom_call.1} parent=0 // pred_fallthru
    _
  %v18 = vld [vmem:[%s0] sm:$0xf]
  %v19 = vld [vmem:[%s0 + $0x4] sm:$0xf]
  %v20 = vld [vmem:[%s0 + $0x8] sm:$0xf]
  %v21 = vld [vmem:[%s0 + $0xc] sm:$0xf]
  %v22 = vld [vmem:[%s0 + $0x10] sm:$0xf]
  %v23 = vld [vmem:[%s0 + $0x14] sm:$0xf]
  %v24 = vld [vmem:[%s0 + $0x18] sm:$0xf]
  %v25 = vld [vmem:[%s0 + $0x1c] sm:$0xf]
  %v26 = vld [vmem:[%s0 + $0x20] sm:$0xf]
  %v27 = vld [vmem:[%s0 + $0x24] sm:$0xf]
  %v28 = vld [vmem:[%s0 + $0x28] sm:$0xf]
  %v29 = vld [vmem:[%s0 + $0x2c] sm:$0xf]
  %v30 = vld [vmem:[%s0 + $0x30] sm:$0xf]
  %v31 = vld [vmem:[%s0 + $0x34] sm:$0xf]
  %v32 = vld [vmem:[%s0 + $0x38] sm:$0xf]
  %v33 = vld [vmem:[%s0 + $0x3c] sm:$0xf]
  %v34 = vld [vmem:[%s0 + $0x40] sm:$0xf]
  %v35 = vld [vmem:[%s0 + $0x44] sm:$0xf]
  %v36 = vld [vmem:[%s0 + $0x48] sm:$0xf]
  %v37 = vld [vmem:[%s0 + $0x4c] sm:$0xf]
  %v38 = vld [vmem:[%s0 + $0x50] sm:$0xf]
  %v39 = vld [vmem:[%s0 + $0x54] sm:$0xf]
  %v40 = vld [vmem:[%s0 + $0x58] sm:$0xf]
  %v41 = vld [vmem:[%s0 + $0x5c] sm:$0xf]
  %v42 = vld [vmem:[%s0 + $0x60] sm:$0xf]
  %v43 = vld [vmem:[%s0 + $0x64] sm:$0xf]
  %v44 = vld [vmem:[%s0 + $0x68] sm:$0xf]
  %v45 = vld [vmem:[%s0 + $0x6c] sm:$0xf]
  %v46 = vld [vmem:[%s0 + $0x70] sm:$0xf]
  %v47 = vld [vmem:[%s0 + $0x74] sm:$0xf]
  %v48 = vld [vmem:[%s0 + $0x78] sm:$0xf]
  %v49 = vld [vmem:[%s0 + $0x7c] sm:$0xf]
  %v50 = vld [vmem:[%s0 + $0x80] sm:$0xf]
  %v51 = vld [vmem:[%s0 + $0x84] sm:$0xf]
  %v52 = vld [vmem:[%s0 + $0x88] sm:$0xf]
  %v53 = vld [vmem:[%s0 + $0x8c] sm:$0xf]
  %v54 = vld [vmem:[%s0 + $0x90] sm:$0xf]
  %v55 = vld [vmem:[%s0 + $0x94] sm:$0xf]
  %v56 = vld [vmem:[%s0 + $0x98] sm:$0xf]
  %v57 = vld [vmem:[%s0 + $0x9c] sm:$0xf]
  %v58 = vld [vmem:[%s0 + $0xa0] sm:$0xf]
  %v59 = vld [vmem:[%s0 + $0xa4] sm:$0xf]
  %v60 = vld [vmem:[%s0 + $0xa8] sm:$0xf]
  %v61 = vld [vmem:[%s0 + $0xac] sm:$0xf]
  %v62 = vld [vmem:[%s0 + $0xb0] sm:$0xf]
  %v63 = vld [vmem:[%s0 + $0xb4] sm:$0xf]
  %v64 = vld [vmem:[%s0 + $0xb8] sm:$0xf]
  %v65 = vld [vmem:[%s0 + $0xbc] sm:$0xf]
  %v66 = vld [vmem:[%s0 + $0xc0] sm:$0xf]
  %v67 = vld [vmem:[%s0 + $0xc4] sm:$0xf]
  %v68 = vld [vmem:[%s0 + $0xc8] sm:$0xf]
  %v69 = vld [vmem:[%s0 + $0xcc] sm:$0xf]
  %v70 = vld [vmem:[%s0 + $0xd0] sm:$0xf]
  %v71 = vld [vmem:[%s0 + $0xd4] sm:$0xf]
  %v72 = vld [vmem:[%s0 + $0xd8] sm:$0xf]
  %v73 = vld [vmem:[%s0 + $0xdc] sm:$0xf]
  %v74 = vld [vmem:[%s0 + $0xe0] sm:$0xf]
  %v75 = vld [vmem:[%s0 + $0xe4] sm:$0xf]
  %v76 = vld [vmem:[%s0 + $0xe8] sm:$0xf]
  %v77 = vld [vmem:[%s0 + $0xec] sm:$0xf]
  %v78 = vld [vmem:[%s0 + $0xf0] sm:$0xf]
  %v79 = vld [vmem:[%s0 + $0xf4] sm:$0xf]
  %v80 = vld [vmem:[%s0 + $0xf8] sm:$0xf]
  %v81 = vld [vmem:[%s0 + $0xfc] sm:$0xf]
  %v82 = vld [vmem:[%s1] sm:$0xf]
  %v83 = vld [vmem:[%s1 + $0x4] sm:$0xf]
  %v84 = vld [vmem:[%s1 + $0x8] sm:$0xf]
  %v85 = vld [vmem:[%s1 + $0xc] sm:$0xf]
  %v86 = vld [vmem:[%s1 + $0x10] sm:$0x3]
  %v151 = vunpack.c.l.b16 %v18
  %v152 = vunpack.c.l.b16 %v19
  %v153 = vunpack.c.l.b16 %v20
  %v154 = vunpack.c.l.b16 %v21
  %v155 = vunpack.c.l.b16 %v22
  %v156 = vunpack.c.l.b16 %v23
  %v157 = vunpack.c.l.b16 %v24
  %v158 = vunpack.c.l.b16 %v25
  %v159 = vunpack.c.l.b16 %v26
  %v160 = vunpack.c.l.b16 %v27
  %v161 = vunpack.c.l.b16 %v28
  %v162 = vunpack.c.l.b16 %v29
  %v163 = vunpack.c.l.b16 %v30
  %v164 = vunpack.c.l.b16 %v31
  %v165 = vunpack.c.l.b16 %v32
  %v166 = vunpack.c.l.b16 %v33
  %v167 = vunpack.c.l.b16 %v34
  %v168 = vunpack.c.l.b16 %v35
  %v169 = vunpack.c.l.b16 %v36
  %v170 = vunpack.c.l.b16 %v37
  %v171 = vunpack.c.l.b16 %v38
  %v172 = vunpack.c.l.b16 %v39
  %v173 = vunpack.c.l.b16 %v40
  %v174 = vunpack.c.l.b16 %v41
  %v175 = vunpack.c.l.b16 %v42
  %v176 = vunpack.c.l.b16 %v43
  %v177 = vunpack.c.l.b16 %v44
  %v178 = vunpack.c.l.b16 %v45
  %v179 = vunpack.c.l.b16 %v46
  %v180 = vunpack.c.l.b16 %v47
  %v181 = vunpack.c.l.b16 %v48
  %v182 = vunpack.c.l.b16 %v49
  %v183 = vunpack.c.l.b16 %v50
  %v184 = vunpack.c.l.b16 %v51
  %v185 = vunpack.c.l.b16 %v52
  %v186 = vunpack.c.l.b16 %v53
  %v187 = vunpack.c.l.b16 %v54
  %v188 = vunpack.c.l.b16 %v55
  %v189 = vunpack.c.l.b16 %v56
  %v190 = vunpack.c.l.b16 %v57
  %v191 = vunpack.c.l.b16 %v58
  %v192 = vunpack.c.l.b16 %v59
  %v193 = vunpack.c.l.b16 %v60
  %v194 = vunpack.c.l.b16 %v61
  %v195 = vunpack.c.l.b16 %v62
  %v196 = vunpack.c.l.b16 %v63
  %v197 = vunpack.c.l.b16 %v64
  %v198 = vunpack.c.l.b16 %v65
  %v199 = vunpack.c.l.b16 %v66
  %v200 = vunpack.c.l.b16 %v67
  %v201 = vunpack.c.l.b16 %v68
  %v202 = vunpack.c.l.b16 %v69
  %v203 = vunpack.c.l.b16 %v70
  %v204 = vunpack.c.l.b16 %v71
  %v205 = vunpack.c.l.b16 %v72
  %v206 = vunpack.c.l.b16 %v73
  %v207 = vunpack.c.l.b16 %v74
  %v208 = vunpack.c.l.b16 %v75
  %v209 = vunpack.c.l.b16 %v76
  %v210 = vunpack.c.l.b16 %v77
  %v211 = vunpack.c.l.b16 %v78
  %v212 = vunpack.c.l.b16 %v79
  %v213 = vunpack.c.l.b16 %v80
  %v214 = vunpack.c.l.b16 %v81
  %v215 = vpack.c.b16 %v152, %v151
  %v216 = vpack.c.b16 %v154, %v153
  %v217 = vpack.c.b16 %v156, %v155
  %v218 = vpack.c.b16 %v158, %v157
  %v219 = vpack.c.b16 %v160, %v159
  %v220 = vpack.c.b16 %v162, %v161
  %v221 = vpack.c.b16 %v164, %v163
  %v222 = vpack.c.b16 %v166, %v165
  %v223 = vpack.c.b16 %v168, %v167
  %v224 = vpack.c.b16 %v170, %v169
  %v225 = vpack.c.b16 %v172, %v171
  %v226 = vpack.c.b16 %v174, %v173
  %v227 = vpack.c.b16 %v176, %v175
  %v228 = vpack.c.b16 %v178, %v177
  %v229 = vpack.c.b16 %v180, %v179
  %v230 = vpack.c.b16 %v182, %v181
  %v231 = vpack.c.b16 %v184, %v183
  %v232 = vpack.c.b16 %v186, %v185
  %v233 = vpack.c.b16 %v188, %v187
  %v234 = vpack.c.b16 %v190, %v189
  %v235 = vpack.c.b16 %v192, %v191
  %v236 = vpack.c.b16 %v194, %v193
  %v237 = vpack.c.b16 %v196, %v195
  %v238 = vpack.c.b16 %v198, %v197
  %v239 = vpack.c.b16 %v200, %v199
  %v240 = vpack.c.b16 %v202, %v201
  %v241 = vpack.c.b16 %v204, %v203
  %v242 = vpack.c.b16 %v206, %v205
  %v243 = vpack.c.b16 %v208, %v207
  %v244 = vpack.c.b16 %v210, %v209
  %v245 = vpack.c.b16 %v212, %v211
  %v246 = vpack.c.b16 %v214, %v213
  %v252 = vunpack.c.l.b16 %v82
  %v253 = vunpack.c.l.b16 %v83
  %v254 = vunpack.c.l.b16 %v84
  %v255 = vunpack.c.l.b16 %v85
  %v256 = vunpack.c.l.b16 %v86
  %v257 = vpack.c.b16 %v253, %v252
  %v258 = vpack.c.b16 %v255, %v254
  %v259 = vpack.c.b16 %v256, %v256
  %vm262 = vcmask 293888
  %v264 = vsel %vm262, %v215, 0
  %v267 = vsel %vm262, %v216, 0
  %v270 = vsel %vm262, %v217, 0
  %v273 = vsel %vm262, %v218, 0
  %v276 = vsel %vm262, %v219, 0
  %v279 = vsel %vm262, %v220, 0
  %v282 = vsel %vm262, %v221, 0
  %v285 = vsel %vm262, %v222, 0
  %v288 = vsel %vm262, %v223, 0
  %v291 = vsel %vm262, %v224, 0
  %v294 = vsel %vm262, %v225, 0
  %v297 = vsel %vm262, %v226, 0
  %v300 = vsel %vm262, %v227, 0
  %v303 = vsel %vm262, %v228, 0
  %v306 = vsel %vm262, %v229, 0
  %v309 = vsel %vm262, %v230, 0
  %v312 = vsel %vm262, %v231, 0
  %v315 = vsel %vm262, %v232, 0
  %v318 = vsel %vm262, %v233, 0
  %v321 = vsel %vm262, %v234, 0
  %v324 = vsel %vm262, %v235, 0
  %v327 = vsel %vm262, %v236, 0
  %v330 = vsel %vm262, %v237, 0
  %v333 = vsel %vm262, %v238, 0
  %v336 = vsel %vm262, %v239, 0
  %v339 = vsel %vm262, %v240, 0
  %v342 = vsel %vm262, %v241, 0
  %v345 = vsel %vm262, %v242, 0
  %v348 = vsel %vm262, %v243, 0
  %v351 = vsel %vm262, %v244, 0
  %v354 = vsel %vm262, %v245, 0
  %v357 = vsel %vm262, %v246, 0
  %vm359 = vcmask 1041408
  %v361 = vsel %vm359, %v259, 0
  %363 = vmatprep.subr.bf16.mxu0 0
  %364 = vmatpush1.bf16.msra.mxu0 %v257
  %365 = vmatprep.subr.bf16.mxu0 0
  %366 = vmatpush1.bf16.msra.mxu0 %v258
  %367 = vmatprep.subr.bf16.mxu0 0
  %368 = vmatpush1.bf16.msra.mxu0 %v361
  %369 = vmatprep.subr.bf16.mxu0 0
  %370 = vmatpush1.bf16.msra.mxu0 0
  %371 = vmatprep.subr.bf16.mxu0 0
  %372 = vmatpush1.bf16.msra.mxu0 0
  %373 = vmatprep.subr.bf16.mxu0 0
  %374 = vmatpush1.bf16.msra.mxu0 0
  %375 = vmatprep.subr.bf16.mxu0 0
  %376 = vmatpush1.bf16.msra.mxu0 0
  %377 = vmatprep.subr.bf16.mxu0 0
  %378 = vmatpush1.bf16.msra.mxu0 0
  %379 = vmatprep.subr.bf16.mxu0 0
  %380 = vmatpush1.bf16.msra.mxu0 0
  %381 = vmatprep.subr.bf16.mxu0 0
  %382 = vmatpush1.bf16.msra.mxu0 0
  %383 = vmatprep.subr.bf16.mxu0 0
  %384 = vmatpush1.bf16.msra.mxu0 0
  %385 = vmatprep.subr.bf16.mxu0 0
  %386 = vmatpush1.bf16.msra.mxu0 0
  %387 = vmatprep.subr.bf16.mxu0 0
  %388 = vmatpush1.bf16.msra.mxu0 0
  %389 = vmatprep.subr.bf16.mxu0 0
  %390 = vmatpush1.bf16.msra.mxu0 0
  %391 = vmatprep.subr.bf16.mxu0 0
  %392 = vmatpush1.bf16.msra.mxu0 0
  %393 = vmatprep.subr.bf16.mxu0 0
  %394 = vmatpush1.bf16.msra.mxu0 0
  %395 = vmatprep.mubr.bf16.mxu0 0
  %396 = vmatmul.mubr.bf16.gmra.mrb[0].mxu0 %v264
  %v397 = vpop.f32.mrb[0].mxu0
  %v398 = vadd.f32 0.0, %v397
  %v399 = vpop.f32.mrb[0].mxu0
  %v400 = vpop.f32.mrb[0].mxu0
  %v401 = vadd.f32 0.0, %v400
  %v402 = vpop.f32.mrb[0].mxu0
  %403 = vmatprep.mubr.bf16.mxu0 0
  %404 = vmatmul.mubr.bf16.gmra.mrb[0].mxu0 %v267
  %v405 = vpop.f32.mrb[0].mxu0
  %v406 = vadd.f32 0.0, %v405
  %v407 = vpop.f32.mrb[0].mxu0
  %v408 = vpop.f32.mrb[0].mxu0
  %v409 = vadd.f32 0.0, %v408
  %v410 = vpop.f32.mrb[0].mxu0
  %411 = vmatprep.mubr.bf16.mxu0 0
  %412 = vmatmul.mubr.bf16.gmra.mrb[0].mxu0 %v270
  %v413 = vpop.f32.mrb[0].mxu0
  %v414 = vadd.f32 0.0, %v413
  %v415 = vpop.f32.mrb[0].mxu0
  %v416 = vpop.f32.mrb[0].mxu0
  %v417 = vadd.f32 0.0, %v416
  %v418 = vpop.f32.mrb[0].mxu0
  %419 = vmatprep.mubr.bf16.mxu0 0
  %420 = vmatmul.mubr.bf16.gmra.mrb[0].mxu0 %v273
  %v421 = vpop.f32.mrb[0].mxu0
  %v422 = vadd.f32 0.0, %v421
  %v423 = vpop.f32.mrb[0].mxu0
  %v424 = vpop.f32.mrb[0].mxu0
  %v425 = vadd.f32 0.0, %v424
  %v426 = vpop.f32.mrb[0].mxu0
  %427 = vmatprep.mubr.bf16.mxu0 0
  %428 = vmatmul.mubr.bf16.gmra.mrb[0].mxu0 %v276
  %v429 = vpop.f32.mrb[0].mxu0
  %v430 = vadd.f32 0.0, %v429
  %v431 = vpop.f32.mrb[0].mxu0
  %v432 = vpop.f32.mrb[0].mxu0
  %v433 = vadd.f32 0.0, %v432
  %v434 = vpop.f32.mrb[0].mxu0
  %435 = vmatprep.mubr.bf16.mxu0 0
  %436 = vmatmul.mubr.bf16.gmra.mrb[0].mxu0 %v279
  %v437 = vpop.f32.mrb[0].mxu0
  %v438 = vadd.f32 0.0, %v437
  %v439 = vpop.f32.mrb[0].mxu0
  %v440 = vpop.f32.mrb[0].mxu0
  %v441 = vadd.f32 0.0, %v440
  %v442 = vpop.f32.mrb[0].mxu0
  %443 = vmatprep.mubr.bf16.mxu0 0
  %444 = vmatmul.mubr.bf16.gmra.mrb[0].mxu0 %v282
  %v445 = vpop.f32.mrb[0].mxu0
  %v446 = vadd.f32 0.0, %v445
  %v447 = vpop.f32.mrb[0].mxu0
  %v448 = vpop.f32.mrb[0].mxu0
  %v449 = vadd.f32 0.0, %v448
  %v450 = vpop.f32.mrb[0].mxu0
  %451 = vmatprep.mubr.bf16.mxu0 0
  %452 = vmatmul.mubr.bf16.gmra.mrb[0].mxu0 %v285
  %v453 = vpop.f32.mrb[0].mxu0
  %v454 = vadd.f32 0.0, %v453
  %v455 = vpop.f32.mrb[0].mxu0
  %v456 = vpop.f32.mrb[0].mxu0
  %v457 = vadd.f32 0.0, %v456
  %v458 = vpop.f32.mrb[0].mxu0
  %459 = vmatprep.mubr.bf16.mxu0 0
  %460 = vmatmul.mubr.bf16.gmra.mrb[0].mxu0 %v288
  %v461 = vpop.f32.mrb[0].mxu0
  %v462 = vadd.f32 0.0, %v461
  %v463 = vpop.f32.mrb[0].mxu0
  %v464 = vpop.f32.mrb[0].mxu0
  %v465 = vadd.f32 0.0, %v464
  %v466 = vpop.f32.mrb[0].mxu0
  %467 = vmatprep.mubr.bf16.mxu0 0
  %468 = vmatmul.mubr.bf16.gmra.mrb[0].mxu0 %v291
  %v469 = vpop.f32.mrb[0].mxu0
  %v470 = vadd.f32 0.0, %v469
  %v471 = vpop.f32.mrb[0].mxu0
  %v472 = vpop.f32.mrb[0].mxu0
  %v473 = vadd.f32 0.0, %v472
  %v474 = vpop.f32.mrb[0].mxu0
  %475 = vmatprep.mubr.bf16.mxu0 0
  %476 = vmatmul.mubr.bf16.gmra.mrb[0].mxu0 %v294
  %v477 = vpop.f32.mrb[0].mxu0
  %v478 = vadd.f32 0.0, %v477
  %v479 = vpop.f32.mrb[0].mxu0
  %v480 = vpop.f32.mrb[0].mxu0
  %v481 = vadd.f32 0.0, %v480
  %v482 = vpop.f32.mrb[0].mxu0
  %483 = vmatprep.mubr.bf16.mxu0 0
  %484 = vmatmul.mubr.bf16.gmra.mrb[0].mxu0 %v297
  %v485 = vpop.f32.mrb[0].mxu0
  %v486 = vadd.f32 0.0, %v485
  %v487 = vpop.f32.mrb[0].mxu0
  %v488 = vpop.f32.mrb[0].mxu0
  %v489 = vadd.f32 0.0, %v488
  %v490 = vpop.f32.mrb[0].mxu0
  %491 = vmatprep.mubr.bf16.mxu0 0
  %492 = vmatmul.mubr.bf16.gmra.mrb[0].mxu0 %v300
  %v493 = vpop.f32.mrb[0].mxu0
  %v494 = vadd.f32 0.0, %v493
  %v495 = vpop.f32.mrb[0].mxu0
  %v496 = vpop.f32.mrb[0].mxu0
  %v497 = vadd.f32 0.0, %v496
  %v498 = vpop.f32.mrb[0].mxu0
  %499 = vmatprep.mubr.bf16.mxu0 0
  %500 = vmatmul.mubr.bf16.gmra.mrb[0].mxu0 %v303
  %v501 = vpop.f32.mrb[0].mxu0
  %v502 = vadd.f32 0.0, %v501
  %v503 = vpop.f32.mrb[0].mxu0
  %v504 = vpop.f32.mrb[0].mxu0
  %v505 = vadd.f32 0.0, %v504
  %v506 = vpop.f32.mrb[0].mxu0
  %507 = vmatprep.mubr.bf16.mxu0 0
  %508 = vmatmul.mubr.bf16.gmra.mrb[0].mxu0 %v306
  %v509 = vpop.f32.mrb[0].mxu0
  %v510 = vadd.f32 0.0, %v509
  %v511 = vpop.f32.mrb[0].mxu0
  %v512 = vpop.f32.mrb[0].mxu0
  %v513 = vadd.f32 0.0, %v512
  %v514 = vpop.f32.mrb[0].mxu0
  %515 = vmatprep.mubr.bf16.mxu0 0
  %516 = vmatmul.mubr.bf16.gmra.mrb[0].mxu0 %v309
  %v517 = vpop.f32.mrb[0].mxu0
  %v518 = vadd.f32 0.0, %v517
  %v519 = vpop.f32.mrb[0].mxu0
  %v520 = vpop.f32.mrb[0].mxu0
  %v521 = vadd.f32 0.0, %v520
  %v522 = vpop.f32.mrb[0].mxu0
  %523 = vmatprep.mubr.bf16.mxu0 0
  %524 = vmatmul.mubr.bf16.gmra.mrb[0].mxu0 %v312
  %v525 = vpop.f32.mrb[0].mxu0
  %v526 = vadd.f32 0.0, %v525
  %v527 = vpop.f32.mrb[0].mxu0
  %v528 = vpop.f32.mrb[0].mxu0
  %v529 = vadd.f32 0.0, %v528
  %v530 = vpop.f32.mrb[0].mxu0
  %531 = vmatprep.mubr.bf16.mxu0 0
  %532 = vmatmul.mubr.bf16.gmra.mrb[0].mxu0 %v315
  %v533 = vpop.f32.mrb[0].mxu0
  %v534 = vadd.f32 0.0, %v533
  %v535 = vpop.f32.mrb[0].mxu0
  %v536 = vpop.f32.mrb[0].mxu0
  %v537 = vadd.f32 0.0, %v536
  %v538 = vpop.f32.mrb[0].mxu0
  %539 = vmatprep.mubr.bf16.mxu0 0
  %540 = vmatmul.mubr.bf16.gmra.mrb[0].mxu0 %v318
  %v541 = vpop.f32.mrb[0].mxu0
  %v542 = vadd.f32 0.0, %v541
  %v543 = vpop.f32.mrb[0].mxu0
  %v544 = vpop.f32.mrb[0].mxu0
  %v545 = vadd.f32 0.0, %v544
  %v546 = vpop.f32.mrb[0].mxu0
  %547 = vmatprep.mubr.bf16.mxu0 0
  %548 = vmatmul.mubr.bf16.gmra.mrb[0].mxu0 %v321
  %v549 = vpop.f32.mrb[0].mxu0
  %v550 = vadd.f32 0.0, %v549
  %v551 = vpop.f32.mrb[0].mxu0
  %v552 = vpop.f32.mrb[0].mxu0
  %v553 = vadd.f32 0.0, %v552
  %v554 = vpop.f32.mrb[0].mxu0
  %555 = vmatprep.mubr.bf16.mxu0 0
  %556 = vmatmul.mubr.bf16.gmra.mrb[0].mxu0 %v324
  %v557 = vpop.f32.mrb[0].mxu0
  %v558 = vadd.f32 0.0, %v557
  %v559 = vpop.f32.mrb[0].mxu0
  %v560 = vpop.f32.mrb[0].mxu0
  %v561 = vadd.f32 0.0, %v560
  %v562 = vpop.f32.mrb[0].mxu0
  %563 = vmatprep.mubr.bf16.mxu0 0
  %564 = vmatmul.mubr.bf16.gmra.mrb[0].mxu0 %v327
  %v565 = vpop.f32.mrb[0].mxu0
  %v566 = vadd.f32 0.0, %v565
  %v567 = vpop.f32.mrb[0].mxu0
  %v568 = vpop.f32.mrb[0].mxu0
  %v569 = vadd.f32 0.0, %v568
  %v570 = vpop.f32.mrb[0].mxu0
  %571 = vmatprep.mubr.bf16.mxu0 0
  %572 = vmatmul.mubr.bf16.gmra.mrb[0].mxu0 %v330
  %v573 = vpop.f32.mrb[0].mxu0
  %v574 = vadd.f32 0.0, %v573
  %v575 = vpop.f32.mrb[0].mxu0
  %v576 = vpop.f32.mrb[0].mxu0
  %v577 = vadd.f32 0.0, %v576
  %v578 = vpop.f32.mrb[0].mxu0
  %579 = vmatprep.mubr.bf16.mxu0 0
  %580 = vmatmul.mubr.bf16.gmra.mrb[0].mxu0 %v333
  %v581 = vpop.f32.mrb[0].mxu0
  %v582 = vadd.f32 0.0, %v581
  %v583 = vpop.f32.mrb[0].mxu0
  %v584 = vpop.f32.mrb[0].mxu0
  %v585 = vadd.f32 0.0, %v584
  %v586 = vpop.f32.mrb[0].mxu0
  %587 = vmatprep.mubr.bf16.mxu0 0
  %588 = vmatmul.mubr.bf16.gmra.mrb[0].mxu0 %v336
  %v589 = vpop.f32.mrb[0].mxu0
  %v590 = vadd.f32 0.0, %v589
  %v591 = vpop.f32.mrb[0].mxu0
  %v592 = vpop.f32.mrb[0].mxu0
  %v593 = vadd.f32 0.0, %v592
  %v594 = vpop.f32.mrb[0].mxu0
  %595 = vmatprep.mubr.bf16.mxu0 0
  %596 = vmatmul.mubr.bf16.gmra.mrb[0].mxu0 %v339
  %v597 = vpop.f32.mrb[0].mxu0
  %v598 = vadd.f32 0.0, %v597
  %v599 = vpop.f32.mrb[0].mxu0
  %v600 = vpop.f32.mrb[0].mxu0
  %v601 = vadd.f32 0.0, %v600
  %v602 = vpop.f32.mrb[0].mxu0
  %603 = vmatprep.mubr.bf16.mxu0 0
  %604 = vmatmul.mubr.bf16.gmra.mrb[0].mxu0 %v342
  %v605 = vpop.f32.mrb[0].mxu0
  %v606 = vadd.f32 0.0, %v605
  %v607 = vpop.f32.mrb[0].mxu0
  %v608 = vpop.f32.mrb[0].mxu0
  %v609 = vadd.f32 0.0, %v608
  %v610 = vpop.f32.mrb[0].mxu0
  %611 = vmatprep.mubr.bf16.mxu0 0
  %612 = vmatmul.mubr.bf16.gmra.mrb[0].mxu0 %v345
  %v613 = vpop.f32.mrb[0].mxu0
  %v614 = vadd.f32 0.0, %v613
  %v615 = vpop.f32.mrb[0].mxu0
  %v616 = vpop.f32.mrb[0].mxu0
  %v617 = vadd.f32 0.0, %v616
  %v618 = vpop.f32.mrb[0].mxu0
  %619 = vmatprep.mubr.bf16.mxu0 0
  %620 = vmatmul.mubr.bf16.gmra.mrb[0].mxu0 %v348
  %v621 = vpop.f32.mrb[0].mxu0
  %v622 = vadd.f32 0.0, %v621
  %v623 = vpop.f32.mrb[0].mxu0
  %v624 = vpop.f32.mrb[0].mxu0
  %v625 = vadd.f32 0.0, %v624
  %v626 = vpop.f32.mrb[0].mxu0
  %627 = vmatprep.mubr.bf16.mxu0 0
  %628 = vmatmul.mubr.bf16.gmra.mrb[0].mxu0 %v351
  %v629 = vpop.f32.mrb[0].mxu0
  %v630 = vadd.f32 0.0, %v629
  %v631 = vpop.f32.mrb[0].mxu0
  %v632 = vpop.f32.mrb[0].mxu0
  %v633 = vadd.f32 0.0, %v632
  %v634 = vpop.f32.mrb[0].mxu0
  %635 = vmatprep.mubr.bf16.mxu0 0
  %636 = vmatmul.mubr.bf16.gmra.mrb[0].mxu0 %v354
  %v637 = vpop.f32.mrb[0].mxu0
  %v638 = vadd.f32 0.0, %v637
  %v639 = vpop.f32.mrb[0].mxu0
  %v640 = vpop.f32.mrb[0].mxu0
  %v641 = vadd.f32 0.0, %v640
  %v642 = vpop.f32.mrb[0].mxu0
  %643 = vmatprep.mubr.bf16.mxu0 0
  %644 = vmatmul.mubr.bf16.gmra.mrb[0].mxu0 %v357
  %v645 = vpop.f32.mrb[0].mxu0
  %v646 = vadd.f32 0.0, %v645
  %v647 = vpop.f32.mrb[0].mxu0
  %v648 = vpop.f32.mrb[0].mxu0
  %v649 = vadd.f32 0.0, %v648
  %v650 = vpop.f32.mrb[0].mxu0
  %651 = vdwg.mxu0
  %s652 = smul.u32 0, 512
  %s653 = scalar_lea.vmem %s4, %s652
  %vm654 = vcmask 523264
  %655 = vst.msk [vmem:[%s653] sm:$0xff] %vm654, %v398
  %656 = vst.msk [vmem:[%s653 + $0x8] sm:$0xff] %vm654, %v401
  %657 = vst.msk [vmem:[%s653 + $0x10] sm:$0xff] %vm654, %v406
  %658 = vst.msk [vmem:[%s653 + $0x18] sm:$0xff] %vm654, %v409
  %659 = vst.msk [vmem:[%s653 + $0x20] sm:$0xff] %vm654, %v414
  %660 = vst.msk [vmem:[%s653 + $0x28] sm:$0xff] %vm654, %v417
  %661 = vst.msk [vmem:[%s653 + $0x30] sm:$0xff] %vm654, %v422
  %662 = vst.msk [vmem:[%s653 + $0x38] sm:$0xff] %vm654, %v425
  %663 = vst.msk [vmem:[%s653 + $0x40] sm:$0xff] %vm654, %v430
  %664 = vst.msk [vmem:[%s653 + $0x48] sm:$0xff] %vm654, %v433
  %665 = vst.msk [vmem:[%s653 + $0x50] sm:$0xff] %vm654, %v438
  %666 = vst.msk [vmem:[%s653 + $0x58] sm:$0xff] %vm654, %v441
  %667 = vst.msk [vmem:[%s653 + $0x60] sm:$0xff] %vm654, %v446
  %668 = vst.msk [vmem:[%s653 + $0x68] sm:$0xff] %vm654, %v449
  %669 = vst.msk [vmem:[%s653 + $0x70] sm:$0xff] %vm654, %v454
  %670 = vst.msk [vmem:[%s653 + $0x78] sm:$0xff] %vm654, %v457
  %671 = vst.msk [vmem:[%s653 + $0x80] sm:$0xff] %vm654, %v462
  %672 = vst.msk [vmem:[%s653 + $0x88] sm:$0xff] %vm654, %v465
  %673 = vst.msk [vmem:[%s653 + $0x90] sm:$0xff] %vm654, %v470
  %674 = vst.msk [vmem:[%s653 + $0x98] sm:$0xff] %vm654, %v473
  %675 = vst.msk [vmem:[%s653 + $0xa0] sm:$0xff] %vm654, %v478
  %676 = vst.msk [vmem:[%s653 + $0xa8] sm:$0xff] %vm654, %v481
  %677 = vst.msk [vmem:[%s653 + $0xb0] sm:$0xff] %vm654, %v486
  %678 = vst.msk [vmem:[%s653 + $0xb8] sm:$0xff] %vm654, %v489
  %679 = vst.msk [vmem:[%s653 + $0xc0] sm:$0xff] %vm654, %v494
  %680 = vst.msk [vmem:[%s653 + $0xc8] sm:$0xff] %vm654, %v497
  %681 = vst.msk [vmem:[%s653 + $0xd0] sm:$0xff] %vm654, %v502
  %682 = vst.msk [vmem:[%s653 + $0xd8] sm:$0xff] %vm654, %v505
  %683 = vst.msk [vmem:[%s653 + $0xe0] sm:$0xff] %vm654, %v510
  %684 = vst.msk [vmem:[%s653 + $0xe8] sm:$0xff] %vm654, %v513
  %685 = vst.msk [vmem:[%s653 + $0xf0] sm:$0xff] %vm654, %v518
  %686 = vst.msk [vmem:[%s653 + $0xf8] sm:$0xff] %vm654, %v521
  %687 = vst.msk [vmem:[%s653 + $0x100] sm:$0xff] %vm654, %v526
  %688 = vst.msk [vmem:[%s653 + $0x108] sm:$0xff] %vm654, %v529
  %689 = vst.msk [vmem:[%s653 + $0x110] sm:$0xff] %vm654, %v534
  %690 = vst.msk [vmem:[%s653 + $0x118] sm:$0xff] %vm654, %v537
  %691 = vst.msk [vmem:[%s653 + $0x120] sm:$0xff] %vm654, %v542
  %692 = vst.msk [vmem:[%s653 + $0x128] sm:$0xff] %vm654, %v545
  %693 = vst.msk [vmem:[%s653 + $0x130] sm:$0xff] %vm654, %v550
  %694 = vst.msk [vmem:[%s653 + $0x138] sm:$0xff] %vm654, %v553
  %695 = vst.msk [vmem:[%s653 + $0x140] sm:$0xff] %vm654, %v558
  %696 = vst.msk [vmem:[%s653 + $0x148] sm:$0xff] %vm654, %v561
  %697 = vst.msk [vmem:[%s653 + $0x150] sm:$0xff] %vm654, %v566
  %698 = vst.msk [vmem:[%s653 + $0x158] sm:$0xff] %vm654, %v569
  %699 = vst.msk [vmem:[%s653 + $0x160] sm:$0xff] %vm654, %v574
  %700 = vst.msk [vmem:[%s653 + $0x168] sm:$0xff] %vm654, %v577
  %701 = vst.msk [vmem:[%s653 + $0x170] sm:$0xff] %vm654, %v582
  %702 = vst.msk [vmem:[%s653 + $0x178] sm:$0xff] %vm654, %v585
  %703 = vst.msk [vmem:[%s653 + $0x180] sm:$0xff] %vm654, %v590
  %704 = vst.msk [vmem:[%s653 + $0x188] sm:$0xff] %vm654, %v593
  %705 = vst.msk [vmem:[%s653 + $0x190] sm:$0xff] %vm654, %v598
  %706 = vst.msk [vmem:[%s653 + $0x198] sm:$0xff] %vm654, %v601
  %707 = vst.msk [vmem:[%s653 + $0x1a0] sm:$0xff] %vm654, %v606
  %708 = vst.msk [vmem:[%s653 + $0x1a8] sm:$0xff] %vm654, %v609
  %709 = vst.msk [vmem:[%s653 + $0x1b0] sm:$0xff] %vm654, %v614
  %710 = vst.msk [vmem:[%s653 + $0x1b8] sm:$0xff] %vm654, %v617
  %711 = vst.msk [vmem:[%s653 + $0x1c0] sm:$0xff] %vm654, %v622
  %712 = vst.msk [vmem:[%s653 + $0x1c8] sm:$0xff] %vm654, %v625
  %713 = vst.msk [vmem:[%s653 + $0x1d0] sm:$0xff] %vm654, %v630
  %714 = vst.msk [vmem:[%s653 + $0x1d8] sm:$0xff] %vm654, %v633
  %715 = vst.msk [vmem:[%s653 + $0x1e0] sm:$0xff] %vm654, %v638
  %716 = vst.msk [vmem:[%s653 + $0x1e8] sm:$0xff] %vm654, %v641
  %717 = vst.msk [vmem:[%s653 + $0x1f0] sm:$0xff] %vm654, %v646
  %718 = vst.msk [vmem:[%s653 + $0x1f8] sm:$0xff] %vm654, %v649
  %p719 = scmp.eq.s32.totalorder 0, 0
  // Predicated region
  $region18: #{tpu_custom_call.1} parent=0 // pred_check
    %p720 = pneg %p719
  $region19: #{tpu_custom_call.1} parent=0 // pred_check_branch
    %722 = sbr.rel (%p720) target = $region21
  $region20: #{tpu_custom_call.1} parent=0 // pred_region
    %vm723 = vcmask 517120
    %724 = vst.msk [vmem:[#allocation2] sm:$0x3] %vm723, 0.0
  $region21: #{tpu_custom_call.1} parent=0 // pred_fallthru
    _
  %v725 = vld [vmem:[#allocation2] sm:$0x1]
  %v726 = vsel %vm654, %v398, 0.0
  %v727 = vsel %vm654, %v401, 0.0
  %v728 = vadd.f32 %v726, %v727
  %v729 = vsel %vm654, %v406, 0.0
  %v730 = vadd.f32 %v728, %v729
  %v731 = vsel %vm654, %v409, 0.0
  %v732 = vadd.f32 %v730, %v731
  %v733 = vsel %vm654, %v414, 0.0
  %v734 = vadd.f32 %v732, %v733
  %v735 = vsel %vm654, %v417, 0.0
  %v736 = vadd.f32 %v734, %v735
  %v737 = vsel %vm654, %v422, 0.0
  %v738 = vadd.f32 %v736, %v737
  %v739 = vsel %vm654, %v425, 0.0
  %v740 = vadd.f32 %v738, %v739
  %v741 = vsel %vm654, %v430, 0.0
  %v742 = vadd.f32 %v740, %v741
  %v743 = vsel %vm654, %v433, 0.0
  %v744 = vadd.f32 %v742, %v743
  %v745 = vsel %vm654, %v438, 0.0
  %v746 = vadd.f32 %v744, %v745
  %v747 = vsel %vm654, %v441, 0.0
  %v748 = vadd.f32 %v746, %v747
  %v749 = vsel %vm654, %v446, 0.0
  %v750 = vadd.f32 %v748, %v749
  %v751 = vsel %vm654, %v449, 0.0
  %v752 = vadd.f32 %v750, %v751
  %v753 = vsel %vm654, %v454, 0.0
  %v754 = vadd.f32 %v752, %v753
  %v755 = vsel %vm654, %v457, 0.0
  %v756 = vadd.f32 %v754, %v755
  %v757 = vsel %vm654, %v462, 0.0
  %v758 = vadd.f32 %v756, %v757
  %v759 = vsel %vm654, %v465, 0.0
  %v760 = vadd.f32 %v758, %v759
  %v761 = vsel %vm654, %v470, 0.0
  %v762 = vadd.f32 %v760, %v761
  %v763 = vsel %vm654, %v473, 0.0
  %v764 = vadd.f32 %v762, %v763
  %v765 = vsel %vm654, %v478, 0.0
  %v766 = vadd.f32 %v764, %v765
  %v767 = vsel %vm654, %v481, 0.0
  %v768 = vadd.f32 %v766, %v767
  %v769 = vsel %vm654, %v486, 0.0
  %v770 = vadd.f32 %v768, %v769
  %v771 = vsel %vm654, %v489, 0.0
  %v772 = vadd.f32 %v770, %v771
  %v773 = vsel %vm654, %v494, 0.0
  %v774 = vadd.f32 %v772, %v773
  %v775 = vsel %vm654, %v497, 0.0
  %v776 = vadd.f32 %v774, %v775
  %v777 = vsel %vm654, %v502, 0.0
  %v778 = vadd.f32 %v776, %v777
  %v779 = vsel %vm654, %v505, 0.0
  %v780 = vadd.f32 %v778, %v779
  %v781 = vsel %vm654, %v510, 0.0
  %v782 = vadd.f32 %v780, %v781
  %v783 = vsel %vm654, %v513, 0.0
  %v784 = vadd.f32 %v782, %v783
  %v785 = vsel %vm654, %v518, 0.0
  %v786 = vadd.f32 %v784, %v785
  %v787 = vsel %vm654, %v521, 0.0
  %v788 = vadd.f32 %v786, %v787
  %v789 = vsel %vm654, %v526, 0.0
  %v790 = vadd.f32 %v788, %v789
  %v791 = vsel %vm654, %v529, 0.0
  %v792 = vadd.f32 %v790, %v791
  %v793 = vsel %vm654, %v534, 0.0
  %v794 = vadd.f32 %v792, %v793
  %v795 = vsel %vm654, %v537, 0.0
  %v796 = vadd.f32 %v794, %v795
  %v797 = vsel %vm654, %v542, 0.0
  %v798 = vadd.f32 %v796, %v797
  %v799 = vsel %vm654, %v545, 0.0
  %v800 = vadd.f32 %v798, %v799
  %v801 = vsel %vm654, %v550, 0.0
  %v802 = vadd.f32 %v800, %v801
  %v803 = vsel %vm654, %v553, 0.0
  %v804 = vadd.f32 %v802, %v803
  %v805 = vsel %vm654, %v558, 0.0
  %v806 = vadd.f32 %v804, %v805
  %v807 = vsel %vm654, %v561, 0.0
  %v808 = vadd.f32 %v806, %v807
  %v809 = vsel %vm654, %v566, 0.0
  %v810 = vadd.f32 %v808, %v809
  %v811 = vsel %vm654, %v569, 0.0
  %v812 = vadd.f32 %v810, %v811
  %v813 = vsel %vm654, %v574, 0.0
  %v814 = vadd.f32 %v812, %v813
  %v815 = vsel %vm654, %v577, 0.0
  %v816 = vadd.f32 %v814, %v815
  %v817 = vsel %vm654, %v582, 0.0
  %v818 = vadd.f32 %v816, %v817
  %v819 = vsel %vm654, %v585, 0.0
  %v820 = vadd.f32 %v818, %v819
  %v821 = vsel %vm654, %v590, 0.0
  %v822 = vadd.f32 %v820, %v821
  %v823 = vsel %vm654, %v593, 0.0
  %v824 = vadd.f32 %v822, %v823
  %v825 = vsel %vm654, %v598, 0.0
  %v826 = vadd.f32 %v824, %v825
  %v827 = vsel %vm654, %v601, 0.0
  %v828 = vadd.f32 %v826, %v827
  %v829 = vsel %vm654, %v606, 0.0
  %v830 = vadd.f32 %v828, %v829
  %v831 = vsel %vm654, %v609, 0.0
  %v832 = vadd.f32 %v830, %v831
  %v833 = vsel %vm654, %v614, 0.0
  %v834 = vadd.f32 %v832, %v833
  %v835 = vsel %vm654, %v617, 0.0
  %v836 = vadd.f32 %v834, %v835
  %v837 = vsel %vm654, %v622, 0.0
  %v838 = vadd.f32 %v836, %v837
  %v839 = vsel %vm654, %v625, 0.0
  %v840 = vadd.f32 %v838, %v839
  %v841 = vsel %vm654, %v630, 0.0
  %v842 = vadd.f32 %v840, %v841
  %v843 = vsel %vm654, %v633, 0.0
  %v844 = vadd.f32 %v842, %v843
  %v845 = vsel %vm654, %v638, 0.0
  %v846 = vadd.f32 %v844, %v845
  %v847 = vsel %vm654, %v641, 0.0
  %v848 = vadd.f32 %v846, %v847
  %v849 = vsel %vm654, %v646, 0.0
  %v850 = vadd.f32 %v848, %v849
  %v851 = vsel %vm654, %v649, 0.0
  %v852 = vadd.f32 %v850, %v851
  %v853 = vrot.slane %v852, 4
  %v854 = vadd.f32 %v852, %v853
  %v855 = vrot.slane %v854, 2
  %v856 = vadd.f32 %v854, %v855
  %v857 = vrot.slane %v856, 1
  %v858 = vadd.f32 %v856, %v857
  %v859 = vadd.f32 %v725, %v858
  %vm860 = vcmask 516096
  %861 = vst.msk [vmem:[#allocation2] sm:$0x1] %vm860, %v859
  %v862 = vld [vmem:[#allocation2 + $0x1] sm:$0x1]
  %v863 = vmul.f32 %v398, %v398
  %v864 = vmul.f32 %v401, %v401
  %v865 = vmul.f32 %v406, %v406
  %v866 = vmul.f32 %v409, %v409
  %v867 = vmul.f32 %v414, %v414
  %v868 = vmul.f32 %v417, %v417
  %v869 = vmul.f32 %v422, %v422
  %v870 = vmul.f32 %v425, %v425
  %v871 = vmul.f32 %v430, %v430
  %v872 = vmul.f32 %v433, %v433
  %v873 = vmul.f32 %v438, %v438
  %v874 = vmul.f32 %v441, %v441
  %v875 = vmul.f32 %v446, %v446
  %v876 = vmul.f32 %v449, %v449
  %v877 = vmul.f32 %v454, %v454
  %v878 = vmul.f32 %v457, %v457
  %v879 = vmul.f32 %v462, %v462
  %v880 = vmul.f32 %v465, %v465
  %v881 = vmul.f32 %v470, %v470
  %v882 = vmul.f32 %v473, %v473
  %v883 = vmul.f32 %v478, %v478
  %v884 = vmul.f32 %v481, %v481
  %v885 = vmul.f32 %v486, %v486
  %v886 = vmul.f32 %v489, %v489
  %v887 = vmul.f32 %v494, %v494
  %v888 = vmul.f32 %v497, %v497
  %v889 = vmul.f32 %v502, %v502
  %v890 = vmul.f32 %v505, %v505
  %v891 = vmul.f32 %v510, %v510
  %v892 = vmul.f32 %v513, %v513
  %v893 = vmul.f32 %v518, %v518
  %v894 = vmul.f32 %v521, %v521
  %v895 = vmul.f32 %v526, %v526
  %v896 = vmul.f32 %v529, %v529
  %v897 = vmul.f32 %v534, %v534
  %v898 = vmul.f32 %v537, %v537
  %v899 = vmul.f32 %v542, %v542
  %v900 = vmul.f32 %v545, %v545
  %v901 = vmul.f32 %v550, %v550
  %v902 = vmul.f32 %v553, %v553
  %v903 = vmul.f32 %v558, %v558
  %v904 = vmul.f32 %v561, %v561
  %v905 = vmul.f32 %v566, %v566
  %v906 = vmul.f32 %v569, %v569
  %v907 = vmul.f32 %v574, %v574
  %v908 = vmul.f32 %v577, %v577
  %v909 = vmul.f32 %v582, %v582
  %v910 = vmul.f32 %v585, %v585
  %v911 = vmul.f32 %v590, %v590
  %v912 = vmul.f32 %v593, %v593
  %v913 = vmul.f32 %v598, %v598
  %v914 = vmul.f32 %v601, %v601
  %v915 = vmul.f32 %v606, %v606
  %v916 = vmul.f32 %v609, %v609
  %v917 = vmul.f32 %v614, %v614
  %v918 = vmul.f32 %v617, %v617
  %v919 = vmul.f32 %v622, %v622
  %v920 = vmul.f32 %v625, %v625
  %v921 = vmul.f32 %v630, %v630
  %v922 = vmul.f32 %v633, %v633
  %v923 = vmul.f32 %v638, %v638
  %v924 = vmul.f32 %v641, %v641
  %v925 = vmul.f32 %v646, %v646
  %v926 = vmul.f32 %v649, %v649
  %v927 = vsel %vm654, %v863, 0.0
  %v928 = vsel %vm654, %v864, 0.0
  %v929 = vadd.f32 %v927, %v928
  %v930 = vsel %vm654, %v865, 0.0
  %v931 = vadd.f32 %v929, %v930
  %v932 = vsel %vm654, %v866, 0.0
  %v933 = vadd.f32 %v931, %v932
  %v934 = vsel %vm654, %v867, 0.0
  %v935 = vadd.f32 %v933, %v934
  %v936 = vsel %vm654, %v868, 0.0
  %v937 = vadd.f32 %v935, %v936
  %v938 = vsel %vm654, %v869, 0.0
  %v939 = vadd.f32 %v937, %v938
  %v940 = vsel %vm654, %v870, 0.0
  %v941 = vadd.f32 %v939, %v940
  %v942 = vsel %vm654, %v871, 0.0
  %v943 = vadd.f32 %v941, %v942
  %v944 = vsel %vm654, %v872, 0.0
  %v945 = vadd.f32 %v943, %v944
  %v946 = vsel %vm654, %v873, 0.0
  %v947 = vadd.f32 %v945, %v946
  %v948 = vsel %vm654, %v874, 0.0
  %v949 = vadd.f32 %v947, %v948
  %v950 = vsel %vm654, %v875, 0.0
  %v951 = vadd.f32 %v949, %v950
  %v952 = vsel %vm654, %v876, 0.0
  %v953 = vadd.f32 %v951, %v952
  %v954 = vsel %vm654, %v877, 0.0
  %v955 = vadd.f32 %v953, %v954
  %v956 = vsel %vm654, %v878, 0.0
  %v957 = vadd.f32 %v955, %v956
  %v958 = vsel %vm654, %v879, 0.0
  %v959 = vadd.f32 %v957, %v958
  %v960 = vsel %vm654, %v880, 0.0
  %v961 = vadd.f32 %v959, %v960
  %v962 = vsel %vm654, %v881, 0.0
  %v963 = vadd.f32 %v961, %v962
  %v964 = vsel %vm654, %v882, 0.0
  %v965 = vadd.f32 %v963, %v964
  %v966 = vsel %vm654, %v883, 0.0
  %v967 = vadd.f32 %v965, %v966
  %v968 = vsel %vm654, %v884, 0.0
  %v969 = vadd.f32 %v967, %v968
  %v970 = vsel %vm654, %v885, 0.0
  %v971 = vadd.f32 %v969, %v970
  %v972 = vsel %vm654, %v886, 0.0
  %v973 = vadd.f32 %v971, %v972
  %v974 = vsel %vm654, %v887, 0.0
  %v975 = vadd.f32 %v973, %v974
  %v976 = vsel %vm654, %v888, 0.0
  %v977 = vadd.f32 %v975, %v976
  %v978 = vsel %vm654, %v889, 0.0
  %v979 = vadd.f32 %v977, %v978
  %v980 = vsel %vm654, %v890, 0.0
  %v981 = vadd.f32 %v979, %v980
  %v982 = vsel %vm654, %v891, 0.0
  %v983 = vadd.f32 %v981, %v982
  %v984 = vsel %vm654, %v892, 0.0
  %v985 = vadd.f32 %v983, %v984
  %v986 = vsel %vm654, %v893, 0.0
  %v987 = vadd.f32 %v985, %v986
  %v988 = vsel %vm654, %v894, 0.0
  %v989 = vadd.f32 %v987, %v988
  %v990 = vsel %vm654, %v895, 0.0
  %v991 = vadd.f32 %v989, %v990
  %v992 = vsel %vm654, %v896, 0.0
  %v993 = vadd.f32 %v991, %v992
  %v994 = vsel %vm654, %v897, 0.0
  %v995 = vadd.f32 %v993, %v994
  %v996 = vsel %vm654, %v898, 0.0
  %v997 = vadd.f32 %v995, %v996
  %v998 = vsel %vm654, %v899, 0.0
  %v999 = vadd.f32 %v997, %v998
  %v1000 = vsel %vm654, %v900, 0.0
  %v1001 = vadd.f32 %v999, %v1000
  %v1002 = vsel %vm654, %v901, 0.0
  %v1003 = vadd.f32 %v1001, %v1002
  %v1004 = vsel %vm654, %v902, 0.0
  %v1005 = vadd.f32 %v1003, %v1004
  %v1006 = vsel %vm654, %v903, 0.0
  %v1007 = vadd.f32 %v1005, %v1006
  %v1008 = vsel %vm654, %v904, 0.0
  %v1009 = vadd.f32 %v1007, %v1008
  %v1010 = vsel %vm654, %v905, 0.0
  %v1011 = vadd.f32 %v1009, %v1010
  %v1012 = vsel %vm654, %v906, 0.0
  %v1013 = vadd.f32 %v1011, %v1012
  %v1014 = vsel %vm654, %v907, 0.0
  %v1015 = vadd.f32 %v1013, %v1014
  %v1016 = vsel %vm654, %v908, 0.0
  %v1017 = vadd.f32 %v1015, %v1016
  %v1018 = vsel %vm654, %v909, 0.0
  %v1019 = vadd.f32 %v1017, %v1018
  %v1020 = vsel %vm654, %v910, 0.0
  %v1021 = vadd.f32 %v1019, %v1020
  %v1022 = vsel %vm654, %v911, 0.0
  %v1023 = vadd.f32 %v1021, %v1022
  %v1024 = vsel %vm654, %v912, 0.0
  %v1025 = vadd.f32 %v1023, %v1024
  %v1026 = vsel %vm654, %v913, 0.0
  %v1027 = vadd.f32 %v1025, %v1026
  %v1028 = vsel %vm654, %v914, 0.0
  %v1029 = vadd.f32 %v1027, %v1028
  %v1030 = vsel %vm654, %v915, 0.0
  %v1031 = vadd.f32 %v1029, %v1030
  %v1032 = vsel %vm654, %v916, 0.0
  %v1033 = vadd.f32 %v1031, %v1032
  %v1034 = vsel %vm654, %v917, 0.0
  %v1035 = vadd.f32 %v1033, %v1034
  %v1036 = vsel %vm654, %v918, 0.0
  %v1037 = vadd.f32 %v1035, %v1036
  %v1038 = vsel %vm654, %v919, 0.0
  %v1039 = vadd.f32 %v1037, %v1038
  %v1040 = vsel %vm654, %v920, 0.0
  %v1041 = vadd.f32 %v1039, %v1040
  %v1042 = vsel %vm654, %v921, 0.0
  %v1043 = vadd.f32 %v1041, %v1042
  %v1044 = vsel %vm654, %v922, 0.0
  %v1045 = vadd.f32 %v1043, %v1044
  %v1046 = vsel %vm654, %v923, 0.0
  %v1047 = vadd.f32 %v1045, %v1046
  %v1048 = vsel %vm654, %v924, 0.0
  %v1049 = vadd.f32 %v1047, %v1048
  %v1050 = vsel %vm654, %v925, 0.0
  %v1051 = vadd.f32 %v1049, %v1050
  %v1052 = vsel %vm654, %v926, 0.0
  %v1053 = vadd.f32 %v1051, %v1052
  %v1054 = vrot.slane %v1053, 4
  %v1055 = vadd.f32 %v1053, %v1054
  %v1056 = vrot.slane %v1055, 2
  %v1057 = vadd.f32 %v1055, %v1056
  %v1058 = vrot.slane %v1057, 1
  %v1059 = vadd.f32 %v1057, %v1058
  %v1060 = vadd.f32 %v862, %v1059
  %1061 = vst.msk [vmem:[#allocation2 + $0x1] sm:$0x1] %vm860, %v1060
  // Predicated region
  $region22: #{tpu_custom_call.1} parent=0 // pred_check
    %p1062 = pneg %p719
  $region23: #{tpu_custom_call.1} parent=0 // pred_check_branch
    %1064 = sbr.rel (%p1062) target = $region25
  $region24: #{tpu_custom_call.1} parent=0 // pred_region
    %v1065 = vld [vmem:[#allocation2] sm:$0x1]
    %v1066 = vmul.f32 %v1065, 0.001953125
    %v1067 = vld [vmem:[#allocation2 + $0x1] sm:$0x1]
    %v1068 = vmul.f32 %v1067, 0.001953125
    %v1069 = vmul.f32 %v1066, %v1066
    %v1070 = vsub.f32 %v1068, %v1069
    %v1071 = vmax.f32 %v1070, 0.0
    %v1072 = vld [vmem:[%s2] sm:$0x1]
    %v1073 = vadd.f32 %v1071, 1e-05
    %v1074 = vrsqrt.pop %v1073
    %v1075 = vmul.f32 %v1072, %v1074
    %v1076 = vld [vmem:[%s3] sm:$0x1]
    %v1077 = vmul.f32 %v1066, %v1075
    %v1078 = vsub.f32 %v1076, %v1077
    %v1079 = vld [vmem:[%s4] sm:$0xff]
    %v1080 = vld [vmem:[%s4 + $0x8] sm:$0xff]
    %v1081 = vld [vmem:[%s4 + $0x10] sm:$0xff]
    %v1082 = vld [vmem:[%s4 + $0x18] sm:$0xff]
    %v1083 = vld [vmem:[%s4 + $0x20] sm:$0xff]
    %v1084 = vld [vmem:[%s4 + $0x28] sm:$0xff]
    %v1085 = vld [vmem:[%s4 + $0x30] sm:$0xff]
    %v1086 = vld [vmem:[%s4 + $0x38] sm:$0xff]
    %v1087 = vld [vmem:[%s4 + $0x40] sm:$0xff]
    %v1088 = vld [vmem:[%s4 + $0x48] sm:$0xff]
    %v1089 = vld [vmem:[%s4 + $0x50] sm:$0xff]
    %v1090 = vld [vmem:[%s4 + $0x58] sm:$0xff]
    %v1091 = vld [vmem:[%s4 + $0x60] sm:$0xff]
    %v1092 = vld [vmem:[%s4 + $0x68] sm:$0xff]
    %v1093 = vld [vmem:[%s4 + $0x70] sm:$0xff]
    %v1094 = vld [vmem:[%s4 + $0x78] sm:$0xff]
    %v1095 = vld [vmem:[%s4 + $0x80] sm:$0xff]
    %v1096 = vld [vmem:[%s4 + $0x88] sm:$0xff]
    %v1097 = vld [vmem:[%s4 + $0x90] sm:$0xff]
    %v1098 = vld [vmem:[%s4 + $0x98] sm:$0xff]
    %v1099 = vld [vmem:[%s4 + $0xa0] sm:$0xff]
    %v1100 = vld [vmem:[%s4 + $0xa8] sm:$0xff]
    %v1101 = vld [vmem:[%s4 + $0xb0] sm:$0xff]
    %v1102 = vld [vmem:[%s4 + $0xb8] sm:$0xff]
    %v1103 = vld [vmem:[%s4 + $0xc0] sm:$0xff]
    %v1104 = vld [vmem:[%s4 + $0xc8] sm:$0xff]
    %v1105 = vld [vmem:[%s4 + $0xd0] sm:$0xff]
    %v1106 = vld [vmem:[%s4 + $0xd8] sm:$0xff]
    %v1107 = vld [vmem:[%s4 + $0xe0] sm:$0xff]
    %v1108 = vld [vmem:[%s4 + $0xe8] sm:$0xff]
    %v1109 = vld [vmem:[%s4 + $0xf0] sm:$0xff]
    %v1110 = vld [vmem:[%s4 + $0xf8] sm:$0xff]
    %v1111 = vld [vmem:[%s4 + $0x100] sm:$0xff]
    %v1112 = vld [vmem:[%s4 + $0x108] sm:$0xff]
    %v1113 = vld [vmem:[%s4 + $0x110] sm:$0xff]
    %v1114 = vld [vmem:[%s4 + $0x118] sm:$0xff]
    %v1115 = vld [vmem:[%s4 + $0x120] sm:$0xff]
    %v1116 = vld [vmem:[%s4 + $0x128] sm:$0xff]
    %v1117 = vld [vmem:[%s4 + $0x130] sm:$0xff]
    %v1118 = vld [vmem:[%s4 + $0x138] sm:$0xff]
    %v1119 = vld [vmem:[%s4 + $0x140] sm:$0xff]
    %v1120 = vld [vmem:[%s4 + $0x148] sm:$0xff]
    %v1121 = vld [vmem:[%s4 + $0x150] sm:$0xff]
    %v1122 = vld [vmem:[%s4 + $0x158] sm:$0xff]
    %v1123 = vld [vmem:[%s4 + $0x160] sm:$0xff]
    %v1124 = vld [vmem:[%s4 + $0x168] sm:$0xff]
    %v1125 = vld [vmem:[%s4 + $0x170] sm:$0xff]
    %v1126 = vld [vmem:[%s4 + $0x178] sm:$0xff]
    %v1127 = vld [vmem:[%s4 + $0x180] sm:$0xff]
    %v1128 = vld [vmem:[%s4 + $0x188] sm:$0xff]
    %v1129 = vld [vmem:[%s4 + $0x190] sm:$0xff]
    %v1130 = vld [vmem:[%s4 + $0x198] sm:$0xff]
    %v1131 = vld [vmem:[%s4 + $0x1a0] sm:$0xff]
    %v1132 = vld [vmem:[%s4 + $0x1a8] sm:$0xff]
    %v1133 = vld [vmem:[%s4 + $0x1b0] sm:$0xff]
    %v1134 = vld [vmem:[%s4 + $0x1b8] sm:$0xff]
    %v1135 = vld [vmem:[%s4 + $0x1c0] sm:$0xff]
    %v1136 = vld [vmem:[%s4 + $0x1c8] sm:$0xff]
    %v1137 = vld [vmem:[%s4 + $0x1d0] sm:$0xff]
    %v1138 = vld [vmem:[%s4 + $0x1d8] sm:$0xff]
    %v1139 = vld [vmem:[%s4 + $0x1e0] sm:$0xff]
    %v1140 = vld [vmem:[%s4 + $0x1e8] sm:$0xff]
    %v1141 = vld [vmem:[%s4 + $0x1f0] sm:$0xff]
    %v1142 = vld [vmem:[%s4 + $0x1f8] sm:$0xff]
    %v1144 = vlaneseq
    %v1145 = vshrl.u32 %v1144, 7
    %v1146 = vsub.s32 0, %v1145
    %v1147 = vrot.slane %v1075, %v1146
    %v1149 = vmul.f32 %v1079, %v1147
    %v1150 = vmul.f32 %v1080, %v1147
    %v1151 = vmul.f32 %v1081, %v1147
    %v1152 = vmul.f32 %v1082, %v1147
    %v1153 = vmul.f32 %v1083, %v1147
    %v1154 = vmul.f32 %v1084, %v1147
    %v1155 = vmul.f32 %v1085, %v1147
    %v1156 = vmul.f32 %v1086, %v1147
    %v1157 = vmul.f32 %v1087, %v1147
    %v1158 = vmul.f32 %v1088, %v1147
    %v1159 = vmul.f32 %v1089, %v1147
    %v1160 = vmul.f32 %v1090, %v1147
    %v1161 = vmul.f32 %v1091, %v1147
    %v1162 = vmul.f32 %v1092, %v1147
    %v1163 = vmul.f32 %v1093, %v1147
    %v1164 = vmul.f32 %v1094, %v1147
    %v1165 = vmul.f32 %v1095, %v1147
    %v1166 = vmul.f32 %v1096, %v1147
    %v1167 = vmul.f32 %v1097, %v1147
    %v1168 = vmul.f32 %v1098, %v1147
    %v1169 = vmul.f32 %v1099, %v1147
    %v1170 = vmul.f32 %v1100, %v1147
    %v1171 = vmul.f32 %v1101, %v1147
    %v1172 = vmul.f32 %v1102, %v1147
    %v1173 = vmul.f32 %v1103, %v1147
    %v1174 = vmul.f32 %v1104, %v1147
    %v1175 = vmul.f32 %v1105, %v1147
    %v1176 = vmul.f32 %v1106, %v1147
    %v1177 = vmul.f32 %v1107, %v1147
    %v1178 = vmul.f32 %v1108, %v1147
    %v1179 = vmul.f32 %v1109, %v1147
    %v1180 = vmul.f32 %v1110, %v1147
    %v1181 = vmul.f32 %v1111, %v1147
    %v1182 = vmul.f32 %v1112, %v1147
    %v1183 = vmul.f32 %v1113, %v1147
    %v1184 = vmul.f32 %v1114, %v1147
    %v1185 = vmul.f32 %v1115, %v1147
    %v1186 = vmul.f32 %v1116, %v1147
    %v1187 = vmul.f32 %v1117, %v1147
    %v1188 = vmul.f32 %v1118, %v1147
    %v1189 = vmul.f32 %v1119, %v1147
    %v1190 = vmul.f32 %v1120, %v1147
    %v1191 = vmul.f32 %v1121, %v1147
    %v1192 = vmul.f32 %v1122, %v1147
    %v1193 = vmul.f32 %v1123, %v1147
    %v1194 = vmul.f32 %v1124, %v1147
    %v1195 = vmul.f32 %v1125, %v1147
    %v1196 = vmul.f32 %v1126, %v1147
    %v1197 = vmul.f32 %v1127, %v1147
    %v1198 = vmul.f32 %v1128, %v1147
    %v1199 = vmul.f32 %v1129, %v1147
    %v1200 = vmul.f32 %v1130, %v1147
    %v1201 = vmul.f32 %v1131, %v1147
    %v1202 = vmul.f32 %v1132, %v1147
    %v1203 = vmul.f32 %v1133, %v1147
    %v1204 = vmul.f32 %v1134, %v1147
    %v1205 = vmul.f32 %v1135, %v1147
    %v1206 = vmul.f32 %v1136, %v1147
    %v1207 = vmul.f32 %v1137, %v1147
    %v1208 = vmul.f32 %v1138, %v1147
    %v1209 = vmul.f32 %v1139, %v1147
    %v1210 = vmul.f32 %v1140, %v1147
    %v1211 = vmul.f32 %v1141, %v1147
    %v1212 = vmul.f32 %v1142, %v1147
    %v1214 = vlaneseq
    %v1215 = vshrl.u32 %v1214, 7
    %v1216 = vsub.s32 0, %v1215
    %v1217 = vrot.slane %v1078, %v1216
    %v1219 = vadd.f32 %v1149, %v1217
    %v1220 = vadd.f32 %v1150, %v1217
    %v1221 = vadd.f32 %v1151, %v1217
    %v1222 = vadd.f32 %v1152, %v1217
    %v1223 = vadd.f32 %v1153, %v1217
    %v1224 = vadd.f32 %v1154, %v1217
    %v1225 = vadd.f32 %v1155, %v1217
    %v1226 = vadd.f32 %v1156, %v1217
    %v1227 = vadd.f32 %v1157, %v1217
    %v1228 = vadd.f32 %v1158, %v1217
    %v1229 = vadd.f32 %v1159, %v1217
    %v1230 = vadd.f32 %v1160, %v1217
    %v1231 = vadd.f32 %v1161, %v1217
    %v1232 = vadd.f32 %v1162, %v1217
    %v1233 = vadd.f32 %v1163, %v1217
    %v1234 = vadd.f32 %v1164, %v1217
    %v1235 = vadd.f32 %v1165, %v1217
    %v1236 = vadd.f32 %v1166, %v1217
    %v1237 = vadd.f32 %v1167, %v1217
    %v1238 = vadd.f32 %v1168, %v1217
    %v1239 = vadd.f32 %v1169, %v1217
    %v1240 = vadd.f32 %v1170, %v1217
    %v1241 = vadd.f32 %v1171, %v1217
    %v1242 = vadd.f32 %v1172, %v1217
    %v1243 = vadd.f32 %v1173, %v1217
    %v1244 = vadd.f32 %v1174, %v1217
    %v1245 = vadd.f32 %v1175, %v1217
    %v1246 = vadd.f32 %v1176, %v1217
    %v1247 = vadd.f32 %v1177, %v1217
    %v1248 = vadd.f32 %v1178, %v1217
    %v1249 = vadd.f32 %v1179, %v1217
    %v1250 = vadd.f32 %v1180, %v1217
    %v1251 = vadd.f32 %v1181, %v1217
    %v1252 = vadd.f32 %v1182, %v1217
    %v1253 = vadd.f32 %v1183, %v1217
    %v1254 = vadd.f32 %v1184, %v1217
    %v1255 = vadd.f32 %v1185, %v1217
    %v1256 = vadd.f32 %v1186, %v1217
    %v1257 = vadd.f32 %v1187, %v1217
    %v1258 = vadd.f32 %v1188, %v1217
    %v1259 = vadd.f32 %v1189, %v1217
    %v1260 = vadd.f32 %v1190, %v1217
    %v1261 = vadd.f32 %v1191, %v1217
    %v1262 = vadd.f32 %v1192, %v1217
    %v1263 = vadd.f32 %v1193, %v1217
    %v1264 = vadd.f32 %v1194, %v1217
    %v1265 = vadd.f32 %v1195, %v1217
    %v1266 = vadd.f32 %v1196, %v1217
    %v1267 = vadd.f32 %v1197, %v1217
    %v1268 = vadd.f32 %v1198, %v1217
    %v1269 = vadd.f32 %v1199, %v1217
    %v1270 = vadd.f32 %v1200, %v1217
    %v1271 = vadd.f32 %v1201, %v1217
    %v1272 = vadd.f32 %v1202, %v1217
    %v1273 = vadd.f32 %v1203, %v1217
    %v1274 = vadd.f32 %v1204, %v1217
    %v1275 = vadd.f32 %v1205, %v1217
    %v1276 = vadd.f32 %v1206, %v1217
    %v1277 = vadd.f32 %v1207, %v1217
    %v1278 = vadd.f32 %v1208, %v1217
    %v1279 = vadd.f32 %v1209, %v1217
    %v1280 = vadd.f32 %v1210, %v1217
    %v1281 = vadd.f32 %v1211, %v1217
    %v1282 = vadd.f32 %v1212, %v1217
    %v1283 = vmax.f32 %v1219, 0.0
    %v1284 = vmax.f32 %v1220, 0.0
    %v1285 = vmax.f32 %v1221, 0.0
    %v1286 = vmax.f32 %v1222, 0.0
    %v1287 = vmax.f32 %v1223, 0.0
    %v1288 = vmax.f32 %v1224, 0.0
    %v1289 = vmax.f32 %v1225, 0.0
    %v1290 = vmax.f32 %v1226, 0.0
    %v1291 = vmax.f32 %v1227, 0.0
    %v1292 = vmax.f32 %v1228, 0.0
    %v1293 = vmax.f32 %v1229, 0.0
    %v1294 = vmax.f32 %v1230, 0.0
    %v1295 = vmax.f32 %v1231, 0.0
    %v1296 = vmax.f32 %v1232, 0.0
    %v1297 = vmax.f32 %v1233, 0.0
    %v1298 = vmax.f32 %v1234, 0.0
    %v1299 = vmax.f32 %v1235, 0.0
    %v1300 = vmax.f32 %v1236, 0.0
    %v1301 = vmax.f32 %v1237, 0.0
    %v1302 = vmax.f32 %v1238, 0.0
    %v1303 = vmax.f32 %v1239, 0.0
    %v1304 = vmax.f32 %v1240, 0.0
    %v1305 = vmax.f32 %v1241, 0.0
    %v1306 = vmax.f32 %v1242, 0.0
    %v1307 = vmax.f32 %v1243, 0.0
    %v1308 = vmax.f32 %v1244, 0.0
    %v1309 = vmax.f32 %v1245, 0.0
    %v1310 = vmax.f32 %v1246, 0.0
    %v1311 = vmax.f32 %v1247, 0.0
    %v1312 = vmax.f32 %v1248, 0.0
    %v1313 = vmax.f32 %v1249, 0.0
    %v1314 = vmax.f32 %v1250, 0.0
    %v1315 = vmax.f32 %v1251, 0.0
    %v1316 = vmax.f32 %v1252, 0.0
    %v1317 = vmax.f32 %v1253, 0.0
    %v1318 = vmax.f32 %v1254, 0.0
    %v1319 = vmax.f32 %v1255, 0.0
    %v1320 = vmax.f32 %v1256, 0.0
    %v1321 = vmax.f32 %v1257, 0.0
    %v1322 = vmax.f32 %v1258, 0.0
    %v1323 = vmax.f32 %v1259, 0.0
    %v1324 = vmax.f32 %v1260, 0.0
    %v1325 = vmax.f32 %v1261, 0.0
    %v1326 = vmax.f32 %v1262, 0.0
    %v1327 = vmax.f32 %v1263, 0.0
    %v1328 = vmax.f32 %v1264, 0.0
    %v1329 = vmax.f32 %v1265, 0.0
    %v1330 = vmax.f32 %v1266, 0.0
    %v1331 = vmax.f32 %v1267, 0.0
    %v1332 = vmax.f32 %v1268, 0.0
    %v1333 = vmax.f32 %v1269, 0.0
    %v1334 = vmax.f32 %v1270, 0.0
    %v1335 = vmax.f32 %v1271, 0.0
    %v1336 = vmax.f32 %v1272, 0.0
    %v1337 = vmax.f32 %v1273, 0.0
    %v1338 = vmax.f32 %v1274, 0.0
    %v1339 = vmax.f32 %v1275, 0.0
    %v1340 = vmax.f32 %v1276, 0.0
    %v1341 = vmax.f32 %v1277, 0.0
    %v1342 = vmax.f32 %v1278, 0.0
    %v1343 = vmax.f32 %v1279, 0.0
    %v1344 = vmax.f32 %v1280, 0.0
    %v1345 = vmax.f32 %v1281, 0.0
    %v1346 = vmax.f32 %v1282, 0.0
    %1347 = vst.msk [vmem:[%s4] sm:$0xff] %vm654, %v1283
    %1348 = vst.msk [vmem:[%s4 + $0x8] sm:$0xff] %vm654, %v1284
    %1349 = vst.msk [vmem:[%s4 + $0x10] sm:$0xff] %vm654, %v1285
    %1350 = vst.msk [vmem:[%s4 + $0x18] sm:$0xff] %vm654, %v1286
    %1351 = vst.msk [vmem:[%s4 + $0x20] sm:$0xff] %vm654, %v1287
    %1352 = vst.msk [vmem:[%s4 + $0x28] sm:$0xff] %vm654, %v1288
    %1353 = vst.msk [vmem:[%s4 + $0x30] sm:$0xff] %vm654, %v1289
    %1354 = vst.msk [vmem:[%s4 + $0x38] sm:$0xff] %vm654, %v1290
    %1355 = vst.msk [vmem:[%s4 + $0x40] sm:$0xff] %vm654, %v1291
    %1356 = vst.msk [vmem:[%s4 + $0x48] sm:$0xff] %vm654, %v1292
    %1357 = vst.msk [vmem:[%s4 + $0x50] sm:$0xff] %vm654, %v1293
    %1358 = vst.msk [vmem:[%s4 + $0x58] sm:$0xff] %vm654, %v1294
    %1359 = vst.msk [vmem:[%s4 + $0x60] sm:$0xff] %vm654, %v1295
    %1360 = vst.msk [vmem:[%s4 + $0x68] sm:$0xff] %vm654, %v1296
    %1361 = vst.msk [vmem:[%s4 + $0x70] sm:$0xff] %vm654, %v1297
    %1362 = vst.msk [vmem:[%s4 + $0x78] sm:$0xff] %vm654, %v1298
    %1363 = vst.msk [vmem:[%s4 + $0x80] sm:$0xff] %vm654, %v1299
    %1364 = vst.msk [vmem:[%s4 + $0x88] sm:$0xff] %vm654, %v1300
    %1365 = vst.msk [vmem:[%s4 + $0x90] sm:$0xff] %vm654, %v1301
    %1366 = vst.msk [vmem:[%s4 + $0x98] sm:$0xff] %vm654, %v1302
    %1367 = vst.msk [vmem:[%s4 + $0xa0] sm:$0xff] %vm654, %v1303
    %1368 = vst.msk [vmem:[%s4 + $0xa8] sm:$0xff] %vm654, %v1304
    %1369 = vst.msk [vmem:[%s4 + $0xb0] sm:$0xff] %vm654, %v1305
    %1370 = vst.msk [vmem:[%s4 + $0xb8] sm:$0xff] %vm654, %v1306
    %1371 = vst.msk [vmem:[%s4 + $0xc0] sm:$0xff] %vm654, %v1307
    %1372 = vst.msk [vmem:[%s4 + $0xc8] sm:$0xff] %vm654, %v1308
    %1373 = vst.msk [vmem:[%s4 + $0xd0] sm:$0xff] %vm654, %v1309
    %1374 = vst.msk [vmem:[%s4 + $0xd8] sm:$0xff] %vm654, %v1310
    %1375 = vst.msk [vmem:[%s4 + $0xe0] sm:$0xff] %vm654, %v1311
    %1376 = vst.msk [vmem:[%s4 + $0xe8] sm:$0xff] %vm654, %v1312
    %1377 = vst.msk [vmem:[%s4 + $0xf0] sm:$0xff] %vm654, %v1313
    %1378 = vst.msk [vmem:[%s4 + $0xf8] sm:$0xff] %vm654, %v1314
    %1379 = vst.msk [vmem:[%s4 + $0x100] sm:$0xff] %vm654, %v1315
    %1380 = vst.msk [vmem:[%s4 + $0x108] sm:$0xff] %vm654, %v1316
    %1381 = vst.msk [vmem:[%s4 + $0x110] sm:$0xff] %vm654, %v1317
    %1382 = vst.msk [vmem:[%s4 + $0x118] sm:$0xff] %vm654, %v1318
    %1383 = vst.msk [vmem:[%s4 + $0x120] sm:$0xff] %vm654, %v1319
    %1384 = vst.msk [vmem:[%s4 + $0x128] sm:$0xff] %vm654, %v1320
    %1385 = vst.msk [vmem:[%s4 + $0x130] sm:$0xff] %vm654, %v1321
    %1386 = vst.msk [vmem:[%s4 + $0x138] sm:$0xff] %vm654, %v1322
    %1387 = vst.msk [vmem:[%s4 + $0x140] sm:$0xff] %vm654, %v1323
    %1388 = vst.msk [vmem:[%s4 + $0x148] sm:$0xff] %vm654, %v1324
    %1389 = vst.msk [vmem:[%s4 + $0x150] sm:$0xff] %vm654, %v1325
    %1390 = vst.msk [vmem:[%s4 + $0x158] sm:$0xff] %vm654, %v1326
    %1391 = vst.msk [vmem:[%s4 + $0x160] sm:$0xff] %vm654, %v1327
    %1392 = vst.msk [vmem:[%s4 + $0x168] sm:$0xff] %vm654, %v1328
    %1393 = vst.msk [vmem:[%s4 + $0x170] sm:$0xff] %vm654, %v1329
    %1394 = vst.msk [vmem:[%s4 + $0x178] sm:$0xff] %vm654, %v1330
    %1395 = vst.msk [vmem:[%s4 + $0x180] sm:$0xff] %vm654, %v1331
    %1396 = vst.msk [vmem:[%s4 + $0x188] sm:$0xff] %vm654, %v1332
    %1397 = vst.msk [vmem:[%s4 + $0x190] sm:$0xff] %vm654, %v1333
    %1398 = vst.msk [vmem:[%s4 + $0x198] sm:$0xff] %vm654, %v1334
    %1399 = vst.msk [vmem:[%s4 + $0x1a0] sm:$0xff] %vm654, %v1335
    %1400 = vst.msk [vmem:[%s4 + $0x1a8] sm:$0xff] %vm654, %v1336
    %1401 = vst.msk [vmem:[%s4 + $0x1b0] sm:$0xff] %vm654, %v1337
    %1402 = vst.msk [vmem:[%s4 + $0x1b8] sm:$0xff] %vm654, %v1338
    %1403 = vst.msk [vmem:[%s4 + $0x1c0] sm:$0xff] %vm654, %v1339
    %1404 = vst.msk [vmem:[%s4 + $0x1c8] sm:$0xff] %vm654, %v1340
    %1405 = vst.msk [vmem:[%s4 + $0x1d0] sm:$0xff] %vm654, %v1341
    %1406 = vst.msk [vmem:[%s4 + $0x1d8] sm:$0xff] %vm654, %v1342
    %1407 = vst.msk [vmem:[%s4 + $0x1e0] sm:$0xff] %vm654, %v1343
    %1408 = vst.msk [vmem:[%s4 + $0x1e8] sm:$0xff] %vm654, %v1344
    %1409 = vst.msk [vmem:[%s4 + $0x1f0] sm:$0xff] %vm654, %v1345
    %1410 = vst.msk [vmem:[%s4 + $0x1f8] sm:$0xff] %vm654, %v1346
  $region25: #{tpu_custom_call.1} parent=0 // pred_fallthru
    _
  // Predicated region
  $region26: #{tpu_custom_call.1} parent=0 // pred_check
    _
  $region27: #{tpu_custom_call.1} parent=0 // pred_check_branch
    %1412 = sbr.rel (0) target = $region29
  $region28: #{tpu_custom_call.1} parent=0 // pred_region
    _
  $region29: #{tpu_custom_call.1} parent=0 // pred_fallthru
    _
  // Predicated region
  $region30: #{tpu_custom_call.1} parent=0 // pred_check
    _
  $region31: #{tpu_custom_call.1} parent=0 // pred_check_branch
    %1414 = sbr.rel (0) target = $region33
  $region32: #{tpu_custom_call.1} parent=0 // pred_region
    _
  $region33: #{tpu_custom_call.1} parent=0 // pred_fallthru
    _

</llo_original>
